<compile_context>
chip_gen: v6e
topology: v6e:2x2x1
jax: 0.10.0
libtpu: 0.0.40
codegen_flags: <defaults>
</compile_context>

<pallas_src>
import functools
import math

import jax
import jax.numpy as jnp
from jax.experimental import pallas as pl
from jax.experimental.pallas import tpu as pltpu

# ---------------- config (small, consistent with the module) ----------------
B = 2              # batch
SQ = 8             # query sequence length
SK = 8             # context (key/value) sequence length
HIDDEN = 32        # config.hidden_size
NH = 4             # config.num_attention_heads
HD = HIDDEN // NH  # attention_head_size
CTX_DIM = HIDDEN   # ctx_dim defaults to hidden_size


def _bert_attention_kernel(x_ref, w_ref, b_ref, m_ref, o_ref,
                           *, b, sq, sk, hidden, nh, hd):
    """Single invocation (no grid).

    x_ref : (b*sq + b*sk, hidden)  row-stacked [hidden_states rows ; context rows]
    w_ref : (hidden, 3*hidden)     [wq/sqrt(hd) | wk | wv]
    b_ref : (1, 3*hidden)          [bq/sqrt(hd) | bk | bv]
    m_ref : (b, 1, sk)             additive attention mask (already (1-m)*-1e4)
    o_ref : (b, sq, hidden)        context_layer output
    """
    nq = b * sq

    # --- one fused Q/K/V projection on the MXU (96 output lanes, 1 matmul) ---
    proj = jnp.dot(x_ref[...], w_ref[...],
                   preferred_element_type=jnp.float32) + b_ref[...]

    # hidden_states rows -> Q columns (already scaled by 1/sqrt(hd));
    # context rows       -> K / V columns.
    q = proj[:nq, 0:hidden].reshape(b, sq, hidden)
    k = proj[nq:, hidden:2 * hidden].reshape(b, sk, hidden)
    v = proj[nq:, 2 * hidden:3 * hidden].reshape(b, sk, hidden)

    mask = m_ref[...]                       # (b, 1, sk), broadcasts over queries

    # --- per-head attention, batched over the batch dim (nh static, unrolled) ---
    ctx_heads = []
    for head in range(nh):
        lo = head * hd
        qh = q[:, :, lo:lo + hd]            # (b, sq, hd)
        kh = k[:, :, lo:lo + hd]            # (b, sk, hd)
        vh = v[:, :, lo:lo + hd]            # (b, sk, hd)

        s = jnp.einsum("bqd,bkd->bqk", qh, kh,
                       preferred_element_type=jnp.float32)      # (b, sq, sk)
        s = s + mask

        # numerically stable softmax (f32); EUP approx reciprocal for the denom
        s = s - jnp.max(s, axis=-1, keepdims=True)
        p = jnp.exp(s)
        p = p * pl.reciprocal(jnp.sum(p, axis=-1, keepdims=True), approx=True)

        # dropout(attention_probs): identity in inference mode
        ctx_heads.append(jnp.einsum("bqk,bkd->bqd", p, vh,
                                    preferred_element_type=jnp.float32))

    # single lane-dense store of the full (b, sq, hidden) result
    o_ref[...] = jnp.concatenate(ctx_heads, axis=-1).astype(o_ref.dtype)


def bert_attention(hidden_states, context, attention_mask, params):
    """params: dict with wq, bq, wk, bk, wv, bv (weights stored as [in, out])."""
    b, sq, hdim = hidden_states.shape
    _, sk, cdim = context.shape
    assert cdim == hdim, "fused projection assumes ctx_dim == hidden_size (BERT default)"
    nh = NH
    hd = hdim // nh

    inv_sqrt_d = 1.0 / math.sqrt(hd)

    # host-side constant folding: scale Q by 1/sqrt(hd); fuse the three projections
    w_fused = jnp.concatenate(
        [params["wq"] * inv_sqrt_d, params["wk"], params["wv"]], axis=1)   # (hdim, 3*hdim)
    b_fused = jnp.concatenate(
        [params["bq"] * inv_sqrt_d, params["bk"], params["bv"]]).reshape(1, 3 * hdim)

    # row-stack the two matmul inputs so Q/K/V become ONE (32x96) MXU matmul
    x = jnp.concatenate([hidden_states.reshape(b * sq, hdim),
                         context.reshape(b * sk, cdim)], axis=0)           # (b*(sq+sk), hdim)

    # precompute the additive mask in the wrapper
    mask_add = ((1.0 - attention_mask.astype(jnp.float32)) * -10000.0).reshape(b, 1, sk)

    kernel = functools.partial(_bert_attention_kernel,
                               b=b, sq=sq, sk=sk, hidden=hdim, nh=nh, hd=hd)

    vmem = pl.BlockSpec(memory_space=pltpu.MemorySpace.VMEM)
    return pl.pallas_call(
        kernel,
        out_shape=jax.ShapeDtypeStruct((b, sq, hdim), hidden_states.dtype),
        in_specs=[vmem, vmem, vmem, vmem],
        out_specs=vmem,
    )(x, w_fused, b_fused, mask_add)


def reference(hidden_states, context, attention_mask, params):
    """Pure-JAX reference mirroring the PyTorch forward."""
    q = hidden_states @ params["wq"] + params["bq"]
    k = context @ params["wk"] + params["bk"]
    v = context @ params["wv"] + params["bv"]

    def split(x):
        bb, s, _ = x.shape
        return x.reshape(bb, s, NH, HD).transpose(0, 2, 1, 3)   # (B, NH, S, HD)

    q, k, v = split(q), split(k), split(v)
    scores = jnp.einsum("bhqd,bhkd->bhqk", q, k) / math.sqrt(HD)
    mask = (1.0 - attention_mask.astype(jnp.float32))[:, None, None, :] * -10000.0
    scores = scores + mask
    probs = jax.nn.softmax(scores, axis=-1)
    ctx = jnp.einsum("bhqk,bhkd->bhqd", probs, v)
    return ctx.transpose(0, 2, 1, 3).reshape(hidden_states.shape[0], SQ, HIDDEN)


if __name__ == "__main__":
    key = jax.random.PRNGKey(0)
    keys = jax.random.split(key, 8)

    hidden_states = jax.random.normal(keys[0], (B, SQ, HIDDEN), jnp.float32)
    context = jax.random.normal(keys[1], (B, SK, CTX_DIM), jnp.float32)
    # attention mask: last two context positions of batch 1 are masked out
    attention_mask = jnp.ones((B, SK), jnp.float32).at[1, -2:].set(0.0)

    scale = 0.02
    params = {
        "wq": scale * jax.random.normal(keys[2], (HIDDEN, HIDDEN), jnp.float32),
        "bq": scale * jax.random.normal(keys[3], (HIDDEN,), jnp.float32),
        "wk": scale * jax.random.normal(keys[4], (CTX_DIM, HIDDEN), jnp.float32),
        "bk": scale * jax.random.normal(keys[5], (HIDDEN,), jnp.float32),
        "wv": scale * jax.random.normal(keys[6], (CTX_DIM, HIDDEN), jnp.float32),
        "bv": scale * jax.random.normal(keys[7], (HIDDEN,), jnp.float32),
    }

    out = jax.block_until_ready(bert_attention(hidden_states, context, attention_mask, params))
    ref = reference(hidden_states, context, attention_mask, params)

    assert out.shape == (B, SQ, HIDDEN), out.shape
    # 1e-3 tolerance: pl.reciprocal(approx=True) in the softmax denominator carries a
    # small (<~1e-3 relative) EUP approximation error; everything else is f32-exact.
    assert jnp.allclose(out, ref, atol=1e-3, rtol=1e-3), float(jnp.max(jnp.abs(out - ref)))

    print("KERNEL_OK")
</pallas_src>

<mosaic_0001>
module attributes {stable_mosaic.version = 11 : i64} {
  func.func @_bert_attention_kernel(%arg0: memref<32x32xf32, #tpu.memory_space<vmem>>, %arg1: memref<32x96xf32, #tpu.memory_space<vmem>>, %arg2: memref<1x96xf32, #tpu.memory_space<vmem>>, %arg3: memref<2x1x8xf32, #tpu.memory_space<vmem>>, %arg4: memref<2x8x32xf32, #tpu.memory_space<vmem>>) attributes {dimension_semantics = [], scalar_prefetch = 0 : i64, scratch_operands = 0 : i64, tpu.core_type = #tpu.core_type<tc>} {
    %c0 = arith.constant 0 : index
    %c0_0 = arith.constant 0 : index
    %0 = vector.load %arg0[%c0, %c0_0] : memref<32x32xf32, #tpu.memory_space<vmem>>, vector<32x32xf32>
    %c0_1 = arith.constant 0 : index
    %c0_2 = arith.constant 0 : index
    %1 = vector.load %arg1[%c0_1, %c0_2] : memref<32x96xf32, #tpu.memory_space<vmem>>, vector<32x96xf32>
    %cst = arith.constant dense<0.000000e+00> : vector<32x96xf32>
    %2 = tpu.matmul %0, %1, %cst {dimension_numbers = #tpu.dot_dimension_numbers<[1], [0], [0], [1], [0, 0, 1, 1], [], []>} : vector<32x32xf32>, vector<32x96xf32>, vector<32x96xf32> -> vector<32x96xf32>
    %c0_3 = arith.constant 0 : index
    %c0_4 = arith.constant 0 : index
    %3 = vector.load %arg2[%c0_3, %c0_4] : memref<1x96xf32, #tpu.memory_space<vmem>>, vector<1x96xf32>
    %4 = vector.broadcast %3 : vector<1x96xf32> to vector<32x96xf32>
    %5 = arith.addf %2, %4 : vector<32x96xf32>
    %6 = vector.extract_strided_slice %5 {offsets = [0, 0], sizes = [16, 32], strides = [1, 1]} : vector<32x96xf32> to vector<16x32xf32>
    %7 = vector.shape_cast %6 : vector<16x32xf32> to vector<2x8x32xf32>
    %8 = vector.extract_strided_slice %5 {offsets = [16, 32], sizes = [16, 32], strides = [1, 1]} : vector<32x96xf32> to vector<16x32xf32>
    %9 = vector.shape_cast %8 : vector<16x32xf32> to vector<2x8x32xf32>
    %10 = vector.extract_strided_slice %5 {offsets = [16, 64], sizes = [16, 32], strides = [1, 1]} : vector<32x96xf32> to vector<16x32xf32>
    %11 = vector.shape_cast %10 : vector<16x32xf32> to vector<2x8x32xf32>
    %c0_5 = arith.constant 0 : index
    %c0_6 = arith.constant 0 : index
    %c0_7 = arith.constant 0 : index
    %12 = vector.load %arg3[%c0_5, %c0_6, %c0_7] : memref<2x1x8xf32, #tpu.memory_space<vmem>>, vector<2x1x8xf32>
    %13 = vector.extract_strided_slice %7 {offsets = [0, 0, 0], sizes = [2, 8, 8], strides = [1, 1, 1]} : vector<2x8x32xf32> to vector<2x8x8xf32>
    %14 = vector.extract_strided_slice %9 {offsets = [0, 0, 0], sizes = [2, 8, 8], strides = [1, 1, 1]} : vector<2x8x32xf32> to vector<2x8x8xf32>
    %15 = vector.extract_strided_slice %11 {offsets = [0, 0, 0], sizes = [2, 8, 8], strides = [1, 1, 1]} : vector<2x8x32xf32> to vector<2x8x8xf32>
    "tpu.trace_start"() <{level = 10 : i32, message = "bqd,bkd->bqk"}> : () -> ()
    %cst_8 = arith.constant dense<0.000000e+00> : vector<2x8x8xf32>
    %16 = tpu.matmul %13, %14, %cst_8 {dimension_numbers = #tpu.dot_dimension_numbers<[2], [2], [1], [1], [0, 0, 0, 1, 1, 1], [0], [0]>} : vector<2x8x8xf32>, vector<2x8x8xf32>, vector<2x8x8xf32> -> vector<2x8x8xf32>
    "tpu.trace_stop"() : () -> ()
    %17 = vector.broadcast %12 : vector<2x1x8xf32> to vector<2x8x8xf32>
    %18 = arith.addf %16, %17 : vector<2x8x8xf32>
    %cst_9 = arith.constant dense<0xFF800000> : vector<2x8xf32>
    %19 = vector.multi_reduction <maximumf>, %18, %cst_9 [2] : vector<2x8x8xf32> to vector<2x8xf32>
    %20 = vector.shape_cast %19 : vector<2x8xf32> to vector<2x8x1xf32>
    %21 = vector.broadcast %20 : vector<2x8x1xf32> to vector<2x8x8xf32>
    %22 = arith.subf %18, %21 : vector<2x8x8xf32>
    %23 = math.exp %22 : vector<2x8x8xf32>
    %cst_10 = arith.constant dense<0.000000e+00> : vector<2x8xf32>
    %24 = vector.multi_reduction <add>, %23, %cst_10 [2] : vector<2x8x8xf32> to vector<2x8xf32>
    %25 = vector.shape_cast %24 : vector<2x8xf32> to vector<2x8x1xf32>
    %26 = tpu.reciprocal %25 {approx = true} : vector<2x8x1xf32> -> vector<2x8x1xf32>
    %27 = vector.broadcast %26 : vector<2x8x1xf32> to vector<2x8x8xf32>
    %28 = arith.mulf %23, %27 : vector<2x8x8xf32>
    "tpu.trace_start"() <{level = 10 : i32, message = "bqk,bkd->bqd"}> : () -> ()
    %cst_11 = arith.constant dense<0.000000e+00> : vector<2x8x8xf32>
    %29 = tpu.matmul %28, %15, %cst_11 {dimension_numbers = #tpu.dot_dimension_numbers<[2], [1], [1], [2], [0, 0, 0, 1, 1, 2], [0], [0]>} : vector<2x8x8xf32>, vector<2x8x8xf32>, vector<2x8x8xf32> -> vector<2x8x8xf32>
    "tpu.trace_stop"() : () -> ()
    %30 = vector.extract_strided_slice %7 {offsets = [0, 0, 8], sizes = [2, 8, 8], strides = [1, 1, 1]} : vector<2x8x32xf32> to vector<2x8x8xf32>
    %31 = vector.extract_strided_slice %9 {offsets = [0, 0, 8], sizes = [2, 8, 8], strides = [1, 1, 1]} : vector<2x8x32xf32> to vector<2x8x8xf32>
    %32 = vector.extract_strided_slice %11 {offsets = [0, 0, 8], sizes = [2, 8, 8], strides = [1, 1, 1]} : vector<2x8x32xf32> to vector<2x8x8xf32>
    "tpu.trace_start"() <{level = 10 : i32, message = "bqd,bkd->bqk"}> : () -> ()
    %cst_12 = arith.constant dense<0.000000e+00> : vector<2x8x8xf32>
    %33 = tpu.matmul %30, %31, %cst_12 {dimension_numbers = #tpu.dot_dimension_numbers<[2], [2], [1], [1], [0, 0, 0, 1, 1, 1], [0], [0]>} : vector<2x8x8xf32>, vector<2x8x8xf32>, vector<2x8x8xf32> -> vector<2x8x8xf32>
    "tpu.trace_stop"() : () -> ()
    %34 = vector.broadcast %12 : vector<2x1x8xf32> to vector<2x8x8xf32>
    %35 = arith.addf %33, %34 : vector<2x8x8xf32>
    %cst_13 = arith.constant dense<0xFF800000> : vector<2x8xf32>
    %36 = vector.multi_reduction <maximumf>, %35, %cst_13 [2] : vector<2x8x8xf32> to vector<2x8xf32>
    %37 = vector.shape_cast %36 : vector<2x8xf32> to vector<2x8x1xf32>
    %38 = vector.broadcast %37 : vector<2x8x1xf32> to vector<2x8x8xf32>
    %39 = arith.subf %35, %38 : vector<2x8x8xf32>
    %40 = math.exp %39 : vector<2x8x8xf32>
    %cst_14 = arith.constant dense<0.000000e+00> : vector<2x8xf32>
    %41 = vector.multi_reduction <add>, %40, %cst_14 [2] : vector<2x8x8xf32> to vector<2x8xf32>
    %42 = vector.shape_cast %41 : vector<2x8xf32> to vector<2x8x1xf32>
    %43 = tpu.reciprocal %42 {approx = true} : vector<2x8x1xf32> -> vector<2x8x1xf32>
    %44 = vector.broadcast %43 : vector<2x8x1xf32> to vector<2x8x8xf32>
    %45 = arith.mulf %40, %44 : vector<2x8x8xf32>
    "tpu.trace_start"() <{level = 10 : i32, message = "bqk,bkd->bqd"}> : () -> ()
    %cst_15 = arith.constant dense<0.000000e+00> : vector<2x8x8xf32>
    %46 = tpu.matmul %45, %32, %cst_15 {dimension_numbers = #tpu.dot_dimension_numbers<[2], [1], [1], [2], [0, 0, 0, 1, 1, 2], [0], [0]>} : vector<2x8x8xf32>, vector<2x8x8xf32>, vector<2x8x8xf32> -> vector<2x8x8xf32>
    "tpu.trace_stop"() : () -> ()
    %47 = vector.extract_strided_slice %7 {offsets = [0, 0, 16], sizes = [2, 8, 8], strides = [1, 1, 1]} : vector<2x8x32xf32> to vector<2x8x8xf32>
    %48 = vector.extract_strided_slice %9 {offsets = [0, 0, 16], sizes = [2, 8, 8], strides = [1, 1, 1]} : vector<2x8x32xf32> to vector<2x8x8xf32>
    %49 = vector.extract_strided_slice %11 {offsets = [0, 0, 16], sizes = [2, 8, 8], strides = [1, 1, 1]} : vector<2x8x32xf32> to vector<2x8x8xf32>
    "tpu.trace_start"() <{level = 10 : i32, message = "bqd,bkd->bqk"}> : () -> ()
    %cst_16 = arith.constant dense<0.000000e+00> : vector<2x8x8xf32>
    %50 = tpu.matmul %47, %48, %cst_16 {dimension_numbers = #tpu.dot_dimension_numbers<[2], [2], [1], [1], [0, 0, 0, 1, 1, 1], [0], [0]>} : vector<2x8x8xf32>, vector<2x8x8xf32>, vector<2x8x8xf32> -> vector<2x8x8xf32>
    "tpu.trace_stop"() : () -> ()
    %51 = vector.broadcast %12 : vector<2x1x8xf32> to vector<2x8x8xf32>
    %52 = arith.addf %50, %51 : vector<2x8x8xf32>
    %cst_17 = arith.constant dense<0xFF800000> : vector<2x8xf32>
    %53 = vector.multi_reduction <maximumf>, %52, %cst_17 [2] : vector<2x8x8xf32> to vector<2x8xf32>
    %54 = vector.shape_cast %53 : vector<2x8xf32> to vector<2x8x1xf32>
    %55 = vector.broadcast %54 : vector<2x8x1xf32> to vector<2x8x8xf32>
    %56 = arith.subf %52, %55 : vector<2x8x8xf32>
    %57 = math.exp %56 : vector<2x8x8xf32>
    %cst_18 = arith.constant dense<0.000000e+00> : vector<2x8xf32>
    %58 = vector.multi_reduction <add>, %57, %cst_18 [2] : vector<2x8x8xf32> to vector<2x8xf32>
    %59 = vector.shape_cast %58 : vector<2x8xf32> to vector<2x8x1xf32>
    %60 = tpu.reciprocal %59 {approx = true} : vector<2x8x1xf32> -> vector<2x8x1xf32>
    %61 = vector.broadcast %60 : vector<2x8x1xf32> to vector<2x8x8xf32>
    %62 = arith.mulf %57, %61 : vector<2x8x8xf32>
    "tpu.trace_start"() <{level = 10 : i32, message = "bqk,bkd->bqd"}> : () -> ()
    %cst_19 = arith.constant dense<0.000000e+00> : vector<2x8x8xf32>
    %63 = tpu.matmul %62, %49, %cst_19 {dimension_numbers = #tpu.dot_dimension_numbers<[2], [1], [1], [2], [0, 0, 0, 1, 1, 2], [0], [0]>} : vector<2x8x8xf32>, vector<2x8x8xf32>, vector<2x8x8xf32> -> vector<2x8x8xf32>
    "tpu.trace_stop"() : () -> ()
    %64 = vector.extract_strided_slice %7 {offsets = [0, 0, 24], sizes = [2, 8, 8], strides = [1, 1, 1]} : vector<2x8x32xf32> to vector<2x8x8xf32>
    %65 = vector.extract_strided_slice %9 {offsets = [0, 0, 24], sizes = [2, 8, 8], strides = [1, 1, 1]} : vector<2x8x32xf32> to vector<2x8x8xf32>
    %66 = vector.extract_strided_slice %11 {offsets = [0, 0, 24], sizes = [2, 8, 8], strides = [1, 1, 1]} : vector<2x8x32xf32> to vector<2x8x8xf32>
    "tpu.trace_start"() <{level = 10 : i32, message = "bqd,bkd->bqk"}> : () -> ()
    %cst_20 = arith.constant dense<0.000000e+00> : vector<2x8x8xf32>
    %67 = tpu.matmul %64, %65, %cst_20 {dimension_numbers = #tpu.dot_dimension_numbers<[2], [2], [1], [1], [0, 0, 0, 1, 1, 1], [0], [0]>} : vector<2x8x8xf32>, vector<2x8x8xf32>, vector<2x8x8xf32> -> vector<2x8x8xf32>
    "tpu.trace_stop"() : () -> ()
    %68 = vector.broadcast %12 : vector<2x1x8xf32> to vector<2x8x8xf32>
    %69 = arith.addf %67, %68 : vector<2x8x8xf32>
    %cst_21 = arith.constant dense<0xFF800000> : vector<2x8xf32>
    %70 = vector.multi_reduction <maximumf>, %69, %cst_21 [2] : vector<2x8x8xf32> to vector<2x8xf32>
    %71 = vector.shape_cast %70 : vector<2x8xf32> to vector<2x8x1xf32>
    %72 = vector.broadcast %71 : vector<2x8x1xf32> to vector<2x8x8xf32>
    %73 = arith.subf %69, %72 : vector<2x8x8xf32>
    %74 = math.exp %73 : vector<2x8x8xf32>
    %cst_22 = arith.constant dense<0.000000e+00> : vector<2x8xf32>
    %75 = vector.multi_reduction <add>, %74, %cst_22 [2] : vector<2x8x8xf32> to vector<2x8xf32>
    %76 = vector.shape_cast %75 : vector<2x8xf32> to vector<2x8x1xf32>
    %77 = tpu.reciprocal %76 {approx = true} : vector<2x8x1xf32> -> vector<2x8x1xf32>
    %78 = vector.broadcast %77 : vector<2x8x1xf32> to vector<2x8x8xf32>
    %79 = arith.mulf %74, %78 : vector<2x8x8xf32>
    "tpu.trace_start"() <{level = 10 : i32, message = "bqk,bkd->bqd"}> : () -> ()
    %cst_23 = arith.constant dense<0.000000e+00> : vector<2x8x8xf32>
    %80 = tpu.matmul %79, %66, %cst_23 {dimension_numbers = #tpu.dot_dimension_numbers<[2], [1], [1], [2], [0, 0, 0, 1, 1, 2], [0], [0]>} : vector<2x8x8xf32>, vector<2x8x8xf32>, vector<2x8x8xf32> -> vector<2x8x8xf32>
    "tpu.trace_stop"() : () -> ()
    %81 = tpu.concatenate %29, %46, %63, %80 in 2 : vector<2x8x8xf32>, vector<2x8x8xf32>, vector<2x8x8xf32>, vector<2x8x8xf32> -> vector<2x8x32xf32>
    %c0_24 = arith.constant 0 : index
    %c0_25 = arith.constant 0 : index
    %c0_26 = arith.constant 0 : index
    %82 = vector.load %arg4[%c0_24, %c0_25, %c0_26] : memref<2x8x32xf32, #tpu.memory_space<vmem>>, vector<2x8x32xf32>
    tpu.vector_store %arg4[%c0_24, %c0_25, %c0_26], %81 {strides = array<i32>} : memref<2x8x32xf32, #tpu.memory_space<vmem>>, vector<2x8x32xf32>,
    return
  }
}

</mosaic_0001>

<llo_original>
// kernel: tpu_custom_call.1
$region0: #{tpu_custom_call.1}
  #allocation0 [shape = 'u32[]', space=smem, size = 0x4, offset = 0x4, fixed_abs, tag = 'smem constant byte address 0x4 - core index']
  #allocation1 [shape = 'u32[144,128]{1,0:T(1,128)}', space=vmem, size = 0x12000, scoped, tag = 'internal scratch']
  %s0 = inlined_call_operand.hbm [shape: f32[32,32], index: 0, kind: input, shape index: {}]
  %s1 = inlined_call_operand.hbm [shape: f32[32,96], index: 1, kind: input, shape index: {}]
  %s2 = inlined_call_operand.vmem [shape: f32[1,96], index: 2, kind: input, shape index: {}]
  %s3 = inlined_call_operand.vmem [shape: f32[2,1,8], index: 3, kind: input, shape index: {}]
  %s4 = inlined_call_operand.hbm [shape: f32[2,8,32], index: 4, kind: output, shape index: {}]
  %s5 = sld [smem:[#allocation0]]
  $region34: #{tpu_custom_call.1} parent=0
    _
  %s7 = ssub.s32 1, %s5
  %s8 = scalar_select 0, %s7, %s5
  $region1: #{tpu_custom_call.1} parent=0
    #allocation2 [shape = 'u8[16384]{0}', space=vmem, size = 0x4000, scoped, tag = 'input window, operand 0, single buffered']
    #allocation3 [shape = 's32[1]{0}', space=sflag, size = 0x4, scoped, tag = 'scoped memory for tpu_custom_call.1']
    #allocation4 [shape = 's32[1]{0}', space=sflag, size = 0x4, scoped, tag = 'scoped memory for tpu_custom_call.1']
    #allocation5 [shape = 'u8[16384]{0}', space=vmem, size = 0x4000, scoped, tag = 'input window, operand 1, single buffered']
    #allocation6 [shape = 's32[1]{0}', space=sflag, size = 0x4, scoped, tag = 'scoped memory for tpu_custom_call.1']
    #allocation7 [shape = 'u8[8192]{0}', space=vmem, size = 0x2000, scoped, tag = 'output window, operand 0, single buffered']
    %9 = vsyncpa [#allocation3], 0
    %10 = vsyncpa [#allocation6], 0
    %11 = vsyncpa [#allocation4], 0
    // Predicated region
    $region2: #{tpu_custom_call.1} parent=1 // pred_check
      _
    $region3: #{tpu_custom_call.1} parent=1 // pred_check_branch
      %13 = sbr.rel (0) target = $region5
    $region4: #{tpu_custom_call.1} parent=1 // pred_region
      %s15 = ssub.s32 512, 512
      %16 = vsyncadd [#allocation3], %s15
      %s17 = sshll.u32 [#allocation2], 4
      %s18 = int_to_ptr.vmem [resolvable:$true] %s17
      %23 = dma.hbm_to_vmem [thread:$0]  %s0, 512, %s18, [#allocation3], 128, 128, 8
    $region5: #{tpu_custom_call.1} parent=1 // pred_fallthru
      _
    // Predicated region
    $region6: #{tpu_custom_call.1} parent=1 // pred_check
      _
    $region7: #{tpu_custom_call.1} parent=1 // pred_check_branch
      %25 = sbr.rel (0) target = $region9
    $region8: #{tpu_custom_call.1} parent=1 // pred_region
      %s27 = ssub.s32 512, 512
      %28 = vsyncadd [#allocation6], %s27
      %s29 = sshll.u32 [#allocation5], 4
      %s30 = int_to_ptr.vmem [resolvable:$true] %s29
      %35 = dma.hbm_to_vmem [thread:$0]  %s1, 512, %s30, [#allocation6], 128, 128, 8
    $region9: #{tpu_custom_call.1} parent=1 // pred_fallthru
      _
    // Predicated region
    $region10: #{tpu_custom_call.1} parent=1 // pred_check
      _
    $region11: #{tpu_custom_call.1} parent=1 // pred_check_branch
      %37 = sbr.rel (0) target = $region13
    $region12: #{tpu_custom_call.1} parent=1 // pred_region
      _
    $region13: #{tpu_custom_call.1} parent=1 // pred_fallthru
      _
    // Predicated region
    $region14: #{tpu_custom_call.1} parent=1 // pred_check
      _
    $region15: #{tpu_custom_call.1} parent=1 // pred_check_branch
      %39 = sbr.rel (0) target = $region17
    $region16: #{tpu_custom_call.1} parent=1 // pred_region
      _
    $region17: #{tpu_custom_call.1} parent=1 // pred_fallthru
      _
    // Predicated region
    $region18: #{tpu_custom_call.1} parent=1 // pred_check
      _
    $region19: #{tpu_custom_call.1} parent=1 // pred_check_branch
      %41 = sbr.rel (0) target = $region21
    $region20: #{tpu_custom_call.1} parent=1 // pred_region
      %42 = dma.done [#allocation3], 512
    $region21: #{tpu_custom_call.1} parent=1 // pred_fallthru
      _
    // Predicated region
    $region22: #{tpu_custom_call.1} parent=1 // pred_check
      _
    $region23: #{tpu_custom_call.1} parent=1 // pred_check_branch
      %44 = sbr.rel (0) target = $region25
    $region24: #{tpu_custom_call.1} parent=1 // pred_region
      %45 = dma.done [#allocation6], 512
    $region25: #{tpu_custom_call.1} parent=1 // pred_fallthru
      _
    %v46 = vld [vmem:[#allocation2] sm:$0xff]
    %v47 = vld [vmem:[#allocation2 + $0x8] sm:$0xff]
    %v48 = vld [vmem:[#allocation2 + $0x10] sm:$0xff]
    %v49 = vld [vmem:[#allocation2 + $0x18] sm:$0xff]
    %v50 = vld [vmem:[#allocation5] sm:$0xff]
    %v51 = vld [vmem:[#allocation5 + $0x8] sm:$0xff]
    %v52 = vld [vmem:[#allocation5 + $0x10] sm:$0xff]
    %v53 = vld [vmem:[#allocation5 + $0x18] sm:$0xff]
    %v54 = vld [vmem:[%s2] sm:$0x1]
    %v56 = vlaneseq
    %v57 = vshrl.u32 %v56, 7
    %v58 = vsub.s32 0, %v57
    %v59 = vrot.slane %v54, %v58
    %vm61 = vcmask 261120
    %v63 = vsel %vm61, %v46, 0
    %v66 = vsel %vm61, %v47, 0
    %v69 = vsel %vm61, %v48, 0
    %v72 = vsel %vm61, %v49, 0
    %74 = vmatprep.subr.mxu0 0.0
    %75 = vmatpush1.msra.mxu0 0.0
    %76 = vmatprep.subr.mxu0 0.0
    %77 = vmatpush1.msra.mxu0 0.0
    %78 = vmatprep.subr.mxu0 0.0
    %79 = vmatpush1.msra.mxu0 0.0
    %80 = vmatprep.subr.mxu0 0.0
    %81 = vmatpush1.msra.mxu0 0.0
    %82 = vmatprep.subr.mxu0 0.0
    %83 = vmatpush1.msra.mxu0 0.0
    %84 = vmatprep.subr.mxu0 0.0
    %85 = vmatpush1.msra.mxu0 0.0
    %86 = vmatprep.subr.mxu0 0.0
    %87 = vmatpush1.msra.mxu0 0.0
    %88 = vmatprep.subr.mxu0 0.0
    %89 = vmatpush1.msra.mxu0 0.0
    %90 = vmatprep.subr.mxu0 0.0
    %91 = vmatpush1.msra.mxu0 0.0
    %92 = vmatprep.subr.mxu0 0.0
    %93 = vmatpush1.msra.mxu0 0.0
    %94 = vmatprep.subr.mxu0 0.0
    %95 = vmatpush1.msra.mxu0 0.0
    %96 = vmatprep.subr.mxu0 0.0
    %97 = vmatpush1.msra.mxu0 0.0
    %98 = vmatprep.subr.mxu0 0.0
    %99 = vmatpush1.msra.mxu0 %v53
    %100 = vmatprep.subr.mxu0 0.0
    %101 = vmatpush1.msra.mxu0 %v52
    %102 = vmatprep.subr.mxu0 0.0
    %103 = vmatpush1.msra.mxu0 %v51
    %104 = vmatprep.subr.mxu0 0.0
    %105 = vmatpush1.msra.mxu0 %v50
    %106 = vmatprep.subr.mxu0 0.0
    %107 = vmatpush2.msra.mxu0 0.0
    %108 = vmatprep.subr.mxu0 0.0
    %109 = vmatpush2.msra.mxu0 0.0
    %110 = vmatprep.subr.mxu0 0.0
    %111 = vmatpush2.msra.mxu0 0.0
    %112 = vmatprep.subr.mxu0 0.0
    %113 = vmatpush2.msra.mxu0 0.0
    %114 = vmatprep.subr.mxu0 0.0
    %115 = vmatpush2.msra.mxu0 0.0
    %116 = vmatprep.subr.mxu0 0.0
    %117 = vmatpush2.msra.mxu0 0.0
    %118 = vmatprep.subr.mxu0 0.0
    %119 = vmatpush2.msra.mxu0 0.0
    %120 = vmatprep.subr.mxu0 0.0
    %121 = vmatpush2.msra.mxu0 0.0
    %122 = vmatprep.subr.mxu0 0.0
    %123 = vmatpush2.msra.mxu0 0.0
    %124 = vmatprep.subr.mxu0 0.0
    %125 = vmatpush2.msra.mxu0 0.0
    %126 = vmatprep.subr.mxu0 0.0
    %127 = vmatpush2.msra.mxu0 0.0
    %128 = vmatprep.subr.mxu0 0.0
    %129 = vmatpush2.msra.mxu0 0.0
    %130 = vmatprep.subr.mxu0 0.0
    %131 = vmatpush2.msra.mxu0 0.0
    %132 = vmatprep.subr.mxu0 0.0
    %133 = vmatpush2.msra.mxu0 0.0
    %134 = vmatprep.subr.mxu0 0.0
    %135 = vmatpush2.msra.mxu0 0.0
    %136 = vmatprep.subr.mxu0 0.0
    %137 = vmatpush2.msra.mxu0 0.0
    %138 = vmatprep.mubr.f32.mxu0 0.0
    %139 = vmatmul.mubr.f32.gmra.mxu0 %v63
    %v140 = vpop.f32.mrf.mxu0
    %v141 = vadd.f32 %v59, %v140
    %v142 = vpop.f32.mrf.mxu0
    %143 = vmatprep.mubr.f32.mxu0 0.0
    %144 = vmatmul.mubr.f32.gmra.mxu0 %v66
    %v145 = vpop.f32.mrf.mxu0
    %v146 = vadd.f32 %v59, %v145
    %v147 = vpop.f32.mrf.mxu0
    %148 = vmatprep.mubr.f32.mxu0 0.0
    %149 = vmatmul.mubr.f32.gmra.mxu0 %v69
    %v150 = vpop.f32.mrf.mxu0
    %v151 = vadd.f32 %v59, %v150
    %v152 = vpop.f32.mrf.mxu0
    %153 = vmatprep.mubr.f32.mxu0 0.0
    %154 = vmatmul.mubr.f32.gmra.mxu0 %v72
    %v155 = vpop.f32.mrf.mxu0
    %v156 = vadd.f32 %v59, %v155
    %v157 = vpop.f32.mrf.mxu0
    %158 = vdwg.mxu0
    %v159 = vld [vmem:[%s3] sm:$0x1]
    %v160 = vld [vmem:[%s3 + $0x1] sm:$0x1]
    %v163 = vlaneseq
    %v164 = vshrl.u32 %v163, 7
    %v165 = vsub.s32 0, %v164
    %v166 = vrot.slane %v159, %v165
    %v167 = vlaneseq
    %v168 = vshrl.u32 %v167, 7
    %v169 = vsub.s32 0, %v168
    %v170 = vrot.slane %v160, %v169
    %174 = vrot.lane.b32.xlu0 %v151, 96
    %v175 = vpop.permute.xlu0 %174
    %vm176 = vcmask 64512
    %v178 = vsel %vm176, %v141, 0
    %v180 = vsel %vm176, %v175, 0
    %182 = vmatprep.subr.mxu0 0.0
    %183 = vmatpush1.xpose.msra.mxu0 0.0
    %184 = vmatprep.subr.mxu0 0.0
    %185 = vmatpush1.xpose.msra.mxu0 0.0
    %186 = vmatprep.subr.mxu0 0.0
    %187 = vmatpush1.xpose.msra.mxu0 0.0
    %188 = vmatprep.subr.mxu0 0.0
    %189 = vmatpush1.xpose.msra.mxu0 0.0
    %190 = vmatprep.subr.mxu0 0.0
    %191 = vmatpush1.xpose.msra.mxu0 0.0
    %192 = vmatprep.subr.mxu0 0.0
    %193 = vmatpush1.xpose.msra.mxu0 0.0
    %194 = vmatprep.subr.mxu0 0.0
    %195 = vmatpush1.xpose.msra.mxu0 0.0
    %196 = vmatprep.subr.mxu0 0.0
    %197 = vmatpush1.xpose.msra.mxu0 0.0
    %198 = vmatprep.subr.mxu0 0.0
    %199 = vmatpush1.xpose.msra.mxu0 0.0
    %200 = vmatprep.subr.mxu0 0.0
    %201 = vmatpush1.xpose.msra.mxu0 0.0
    %202 = vmatprep.subr.mxu0 0.0
    %203 = vmatpush1.xpose.msra.mxu0 0.0
    %204 = vmatprep.subr.mxu0 0.0
    %205 = vmatpush1.xpose.msra.mxu0 0.0
    %206 = vmatprep.subr.mxu0 0.0
    %207 = vmatpush1.xpose.msra.mxu0 0.0
    %208 = vmatprep.subr.mxu0 0.0
    %209 = vmatpush1.xpose.msra.mxu0 0.0
    %210 = vmatprep.subr.mxu0 0.0
    %211 = vmatpush1.xpose.msra.mxu0 0.0
    %212 = vmatprep.subr.mxu0 0.0
    %213 = vmatpush1.xpose.msra.mxu0 %v180
    %214 = vmatprep.subr.mxu0 0.0
    %215 = vmatpush2.xpose.msra.mxu0 0.0
    %216 = vmatprep.subr.mxu0 0.0
    %217 = vmatpush2.xpose.msra.mxu0 0.0
    %218 = vmatprep.subr.mxu0 0.0
    %219 = vmatpush2.xpose.msra.mxu0 0.0
    %220 = vmatprep.subr.mxu0 0.0
    %221 = vmatpush2.xpose.msra.mxu0 0.0
    %222 = vmatprep.subr.mxu0 0.0
    %223 = vmatpush2.xpose.msra.mxu0 0.0
    %224 = vmatprep.subr.mxu0 0.0
    %225 = vmatpush2.xpose.msra.mxu0 0.0
    %226 = vmatprep.subr.mxu0 0.0
    %227 = vmatpush2.xpose.msra.mxu0 0.0
    %228 = vmatprep.subr.mxu0 0.0
    %229 = vmatpush2.xpose.msra.mxu0 0.0
    %230 = vmatprep.subr.mxu0 0.0
    %231 = vmatpush2.xpose.msra.mxu0 0.0
    %232 = vmatprep.subr.mxu0 0.0
    %233 = vmatpush2.xpose.msra.mxu0 0.0
    %234 = vmatprep.subr.mxu0 0.0
    %235 = vmatpush2.xpose.msra.mxu0 0.0
    %236 = vmatprep.subr.mxu0 0.0
    %237 = vmatpush2.xpose.msra.mxu0 0.0
    %238 = vmatprep.subr.mxu0 0.0
    %239 = vmatpush2.xpose.msra.mxu0 0.0
    %240 = vmatprep.subr.mxu0 0.0
    %241 = vmatpush2.xpose.msra.mxu0 0.0
    %242 = vmatprep.subr.mxu0 0.0
    %243 = vmatpush2.xpose.msra.mxu0 0.0
    %244 = vmatprep.subr.mxu0 0.0
    %245 = vmatpush2.xpose.msra.mxu0 0.0
    %246 = vmatprep.mubr.f32.mxu0 0.0
    %247 = vmatmul.mubr.f32.gmra.mxu0 %v178
    %v248 = vpop.f32.mrf.mxu0
    %v249 = vadd.f32 %v166, %v248
    %v250 = vpop.f32.mrf.mxu0
    %251 = vdwg.mxu0
    %253 = vrot.lane.b32.xlu0 %v156, 96
    %v254 = vpop.permute.xlu0 %253
    %v256 = vsel %vm176, %v146, 0
    %v258 = vsel %vm176, %v254, 0
    %260 = vmatprep.subr.mxu0 0.0
    %261 = vmatpush1.xpose.msra.mxu0 0.0
    %262 = vmatprep.subr.mxu0 0.0
    %263 = vmatpush1.xpose.msra.mxu0 0.0
    %264 = vmatprep.subr.mxu0 0.0
    %265 = vmatpush1.xpose.msra.mxu0 0.0
    %266 = vmatprep.subr.mxu0 0.0
    %267 = vmatpush1.xpose.msra.mxu0 0.0
    %268 = vmatprep.subr.mxu0 0.0
    %269 = vmatpush1.xpose.msra.mxu0 0.0
    %270 = vmatprep.subr.mxu0 0.0
    %271 = vmatpush1.xpose.msra.mxu0 0.0
    %272 = vmatprep.subr.mxu0 0.0
    %273 = vmatpush1.xpose.msra.mxu0 0.0
    %274 = vmatprep.subr.mxu0 0.0
    %275 = vmatpush1.xpose.msra.mxu0 0.0
    %276 = vmatprep.subr.mxu0 0.0
    %277 = vmatpush1.xpose.msra.mxu0 0.0
    %278 = vmatprep.subr.mxu0 0.0
    %279 = vmatpush1.xpose.msra.mxu0 0.0
    %280 = vmatprep.subr.mxu0 0.0
    %281 = vmatpush1.xpose.msra.mxu0 0.0
    %282 = vmatprep.subr.mxu0 0.0
    %283 = vmatpush1.xpose.msra.mxu0 0.0
    %284 = vmatprep.subr.mxu0 0.0
    %285 = vmatpush1.xpose.msra.mxu0 0.0
    %286 = vmatprep.subr.mxu0 0.0
    %287 = vmatpush1.xpose.msra.mxu0 0.0
    %288 = vmatprep.subr.mxu0 0.0
    %289 = vmatpush1.xpose.msra.mxu0 0.0
    %290 = vmatprep.subr.mxu0 0.0
    %291 = vmatpush1.xpose.msra.mxu0 %v258
    %292 = vmatprep.subr.mxu0 0.0
    %293 = vmatpush2.xpose.msra.mxu0 0.0
    %294 = vmatprep.subr.mxu0 0.0
    %295 = vmatpush2.xpose.msra.mxu0 0.0
    %296 = vmatprep.subr.mxu0 0.0
    %297 = vmatpush2.xpose.msra.mxu0 0.0
    %298 = vmatprep.subr.mxu0 0.0
    %299 = vmatpush2.xpose.msra.mxu0 0.0
    %300 = vmatprep.subr.mxu0 0.0
    %301 = vmatpush2.xpose.msra.mxu0 0.0
    %302 = vmatprep.subr.mxu0 0.0
    %303 = vmatpush2.xpose.msra.mxu0 0.0
    %304 = vmatprep.subr.mxu0 0.0
    %305 = vmatpush2.xpose.msra.mxu0 0.0
    %306 = vmatprep.subr.mxu0 0.0
    %307 = vmatpush2.xpose.msra.mxu0 0.0
    %308 = vmatprep.subr.mxu0 0.0
    %309 = vmatpush2.xpose.msra.mxu0 0.0
    %310 = vmatprep.subr.mxu0 0.0
    %311 = vmatpush2.xpose.msra.mxu0 0.0
    %312 = vmatprep.subr.mxu0 0.0
    %313 = vmatpush2.xpose.msra.mxu0 0.0
    %314 = vmatprep.subr.mxu0 0.0
    %315 = vmatpush2.xpose.msra.mxu0 0.0
    %316 = vmatprep.subr.mxu0 0.0
    %317 = vmatpush2.xpose.msra.mxu0 0.0
    %318 = vmatprep.subr.mxu0 0.0
    %319 = vmatpush2.xpose.msra.mxu0 0.0
    %320 = vmatprep.subr.mxu0 0.0
    %321 = vmatpush2.xpose.msra.mxu0 0.0
    %322 = vmatprep.subr.mxu0 0.0
    %323 = vmatpush2.xpose.msra.mxu0 0.0
    %324 = vmatprep.mubr.f32.mxu0 0.0
    %325 = vmatmul.mubr.f32.gmra.mxu0 %v256
    %v326 = vpop.f32.mrf.mxu0
    %v327 = vadd.f32 %v170, %v326
    %v328 = vpop.f32.mrf.mxu0
    %329 = vdwg.mxu0
    %v330 = vsel %vm176, %v249, -inf
    %331 = vmax.xlane.f32.xlu0 %v330
    %v332 = vpop.xlane.xlu0 %331
    %v333 = vsel %vm176, %v327, -inf
    %334 = vmax.xlane.f32.xlu0 %v333
    %v335 = vpop.xlane.xlu0 %334
    %v336 = vsub.f32 %v249, %v332
    %v337 = vsub.f32 %v327, %v335
    %v338 = vmul.f32 %v336, 1.442695
    %v339 = vpow.pop %v338
    %v340 = vmul.f32 %v337, 1.442695
    %v341 = vpow.pop %v340
    %v342 = vsel %vm176, %v339, 0.0
    %343 = vadd.xlane.f32.xlu0 %v342
    %v344 = vpop.xlane.xlu0 %343
    %v345 = vsel %vm176, %v341, 0.0
    %346 = vadd.xlane.f32.xlu0 %v345
    %v347 = vpop.xlane.xlu0 %346
    %v348 = vrcp.pop %v344
    %v349 = vrcp.pop %v347
    %v350 = vmul.f32 %v339, %v348
    %v351 = vmul.f32 %v341, %v349
    %352 = vrot.lane.b32.xlu0 %v151, 64
    %v353 = vpop.permute.xlu0 %352
    %v356 = vsel %vm176, %v350, 0
    %358 = vmatprep.subr.mxu0 0.0
    %359 = vmatpush1.msra.mxu0 0.0
    %360 = vmatprep.subr.mxu0 0.0
    %361 = vmatpush1.msra.mxu0 0.0
    %362 = vmatprep.subr.mxu0 0.0
    %363 = vmatpush1.msra.mxu0 0.0
    %364 = vmatprep.subr.mxu0 0.0
    %365 = vmatpush1.msra.mxu0 0.0
    %366 = vmatprep.subr.mxu0 0.0
    %367 = vmatpush1.msra.mxu0 0.0
    %368 = vmatprep.subr.mxu0 0.0
    %369 = vmatpush1.msra.mxu0 0.0
    %370 = vmatprep.subr.mxu0 0.0
    %371 = vmatpush1.msra.mxu0 0.0
    %372 = vmatprep.subr.mxu0 0.0
    %373 = vmatpush1.msra.mxu0 0.0
    %374 = vmatprep.subr.mxu0 0.0
    %375 = vmatpush1.msra.mxu0 0.0
    %376 = vmatprep.subr.mxu0 0.0
    %377 = vmatpush1.msra.mxu0 0.0
    %378 = vmatprep.subr.mxu0 0.0
    %379 = vmatpush1.msra.mxu0 0.0
    %380 = vmatprep.subr.mxu0 0.0
    %381 = vmatpush1.msra.mxu0 0.0
    %382 = vmatprep.subr.mxu0 0.0
    %383 = vmatpush1.msra.mxu0 0.0
    %384 = vmatprep.subr.mxu0 0.0
    %385 = vmatpush1.msra.mxu0 0.0
    %386 = vmatprep.subr.mxu0 0.0
    %387 = vmatpush1.msra.mxu0 0.0
    %388 = vmatprep.subr.mxu0 0.0
    %389 = vmatpush1.msra.mxu0 %v353
    %390 = vmatprep.subr.mxu0 0.0
    %391 = vmatpush2.msra.mxu0 0.0
    %392 = vmatprep.subr.mxu0 0.0
    %393 = vmatpush2.msra.mxu0 0.0
    %394 = vmatprep.subr.mxu0 0.0
    %395 = vmatpush2.msra.mxu0 0.0
    %396 = vmatprep.subr.mxu0 0.0
    %397 = vmatpush2.msra.mxu0 0.0
    %398 = vmatprep.subr.mxu0 0.0
    %399 = vmatpush2.msra.mxu0 0.0
    %400 = vmatprep.subr.mxu0 0.0
    %401 = vmatpush2.msra.mxu0 0.0
    %402 = vmatprep.subr.mxu0 0.0
    %403 = vmatpush2.msra.mxu0 0.0
    %404 = vmatprep.subr.mxu0 0.0
    %405 = vmatpush2.msra.mxu0 0.0
    %406 = vmatprep.subr.mxu0 0.0
    %407 = vmatpush2.msra.mxu0 0.0
    %408 = vmatprep.subr.mxu0 0.0
    %409 = vmatpush2.msra.mxu0 0.0
    %410 = vmatprep.subr.mxu0 0.0
    %411 = vmatpush2.msra.mxu0 0.0
    %412 = vmatprep.subr.mxu0 0.0
    %413 = vmatpush2.msra.mxu0 0.0
    %414 = vmatprep.subr.mxu0 0.0
    %415 = vmatpush2.msra.mxu0 0.0
    %416 = vmatprep.subr.mxu0 0.0
    %417 = vmatpush2.msra.mxu0 0.0
    %418 = vmatprep.subr.mxu0 0.0
    %419 = vmatpush2.msra.mxu0 0.0
    %420 = vmatprep.subr.mxu0 0.0
    %421 = vmatpush2.msra.mxu0 0.0
    %422 = vmatprep.mubr.f32.mxu0 0.0
    %423 = vmatmul.mubr.f32.gmra.mxu0 %v356
    %v424 = vpop.f32.mrf.mxu0
    %v425 = vadd.f32 0.0, %v424
    %v426 = vpop.f32.mrf.mxu0
    %427 = vdwg.mxu0
    %428 = vrot.lane.b32.xlu0 %v156, 64
    %v429 = vpop.permute.xlu0 %428
    %v432 = vsel %vm176, %v351, 0
    %434 = vmatprep.subr.mxu0 0.0
    %435 = vmatpush1.msra.mxu0 0.0
    %436 = vmatprep.subr.mxu0 0.0
    %437 = vmatpush1.msra.mxu0 0.0
    %438 = vmatprep.subr.mxu0 0.0
    %439 = vmatpush1.msra.mxu0 0.0
    %440 = vmatprep.subr.mxu0 0.0
    %441 = vmatpush1.msra.mxu0 0.0
    %442 = vmatprep.subr.mxu0 0.0
    %443 = vmatpush1.msra.mxu0 0.0
    %444 = vmatprep.subr.mxu0 0.0
    %445 = vmatpush1.msra.mxu0 0.0
    %446 = vmatprep.subr.mxu0 0.0
    %447 = vmatpush1.msra.mxu0 0.0
    %448 = vmatprep.subr.mxu0 0.0
    %449 = vmatpush1.msra.mxu0 0.0
    %450 = vmatprep.subr.mxu0 0.0
    %451 = vmatpush1.msra.mxu0 0.0
    %452 = vmatprep.subr.mxu0 0.0
    %453 = vmatpush1.msra.mxu0 0.0
    %454 = vmatprep.subr.mxu0 0.0
    %455 = vmatpush1.msra.mxu0 0.0
    %456 = vmatprep.subr.mxu0 0.0
    %457 = vmatpush1.msra.mxu0 0.0
    %458 = vmatprep.subr.mxu0 0.0
    %459 = vmatpush1.msra.mxu0 0.0
    %460 = vmatprep.subr.mxu0 0.0
    %461 = vmatpush1.msra.mxu0 0.0
    %462 = vmatprep.subr.mxu0 0.0
    %463 = vmatpush1.msra.mxu0 0.0
    %464 = vmatprep.subr.mxu0 0.0
    %465 = vmatpush1.msra.mxu0 %v429
    %466 = vmatprep.subr.mxu0 0.0
    %467 = vmatpush2.msra.mxu0 0.0
    %468 = vmatprep.subr.mxu0 0.0
    %469 = vmatpush2.msra.mxu0 0.0
    %470 = vmatprep.subr.mxu0 0.0
    %471 = vmatpush2.msra.mxu0 0.0
    %472 = vmatprep.subr.mxu0 0.0
    %473 = vmatpush2.msra.mxu0 0.0
    %474 = vmatprep.subr.mxu0 0.0
    %475 = vmatpush2.msra.mxu0 0.0
    %476 = vmatprep.subr.mxu0 0.0
    %477 = vmatpush2.msra.mxu0 0.0
    %478 = vmatprep.subr.mxu0 0.0
    %479 = vmatpush2.msra.mxu0 0.0
    %480 = vmatprep.subr.mxu0 0.0
    %481 = vmatpush2.msra.mxu0 0.0
    %482 = vmatprep.subr.mxu0 0.0
    %483 = vmatpush2.msra.mxu0 0.0
    %484 = vmatprep.subr.mxu0 0.0
    %485 = vmatpush2.msra.mxu0 0.0
    %486 = vmatprep.subr.mxu0 0.0
    %487 = vmatpush2.msra.mxu0 0.0
    %488 = vmatprep.subr.mxu0 0.0
    %489 = vmatpush2.msra.mxu0 0.0
    %490 = vmatprep.subr.mxu0 0.0
    %491 = vmatpush2.msra.mxu0 0.0
    %492 = vmatprep.subr.mxu0 0.0
    %493 = vmatpush2.msra.mxu0 0.0
    %494 = vmatprep.subr.mxu0 0.0
    %495 = vmatpush2.msra.mxu0 0.0
    %496 = vmatprep.subr.mxu0 0.0
    %497 = vmatpush2.msra.mxu0 0.0
    %498 = vmatprep.mubr.f32.mxu0 0.0
    %499 = vmatmul.mubr.f32.gmra.mxu0 %v432
    %v500 = vpop.f32.mrf.mxu0
    %v501 = vadd.f32 0.0, %v500
    %v502 = vpop.f32.mrf.mxu0
    %503 = vdwg.mxu0
    %504 = vrot.lane.b32.xlu0 %v141, 120
    %v505 = vpop.permute.xlu0 %504
    %506 = vrot.lane.b32.xlu0 %v151, 88
    %v507 = vpop.permute.xlu0 %506
    %v508 = vsel %vm176, %v505, 0
    %v510 = vsel %vm176, %v507, 0
    %512 = vmatprep.subr.mxu0 0.0
    %513 = vmatpush1.xpose.msra.mxu0 0.0
    %514 = vmatprep.subr.mxu0 0.0
    %515 = vmatpush1.xpose.msra.mxu0 0.0
    %516 = vmatprep.subr.mxu0 0.0
    %517 = vmatpush1.xpose.msra.mxu0 0.0
    %518 = vmatprep.subr.mxu0 0.0
    %519 = vmatpush1.xpose.msra.mxu0 0.0
    %520 = vmatprep.subr.mxu0 0.0
    %521 = vmatpush1.xpose.msra.mxu0 0.0
    %522 = vmatprep.subr.mxu0 0.0
    %523 = vmatpush1.xpose.msra.mxu0 0.0
    %524 = vmatprep.subr.mxu0 0.0
    %525 = vmatpush1.xpose.msra.mxu0 0.0
    %526 = vmatprep.subr.mxu0 0.0
    %527 = vmatpush1.xpose.msra.mxu0 0.0
    %528 = vmatprep.subr.mxu0 0.0
    %529 = vmatpush1.xpose.msra.mxu0 0.0
    %530 = vmatprep.subr.mxu0 0.0
    %531 = vmatpush1.xpose.msra.mxu0 0.0
    %532 = vmatprep.subr.mxu0 0.0
    %533 = vmatpush1.xpose.msra.mxu0 0.0
    %534 = vmatprep.subr.mxu0 0.0
    %535 = vmatpush1.xpose.msra.mxu0 0.0
    %536 = vmatprep.subr.mxu0 0.0
    %537 = vmatpush1.xpose.msra.mxu0 0.0
    %538 = vmatprep.subr.mxu0 0.0
    %539 = vmatpush1.xpose.msra.mxu0 0.0
    %540 = vmatprep.subr.mxu0 0.0
    %541 = vmatpush1.xpose.msra.mxu0 0.0
    %542 = vmatprep.subr.mxu0 0.0
    %543 = vmatpush1.xpose.msra.mxu0 %v510
    %544 = vmatprep.subr.mxu0 0.0
    %545 = vmatpush2.xpose.msra.mxu0 0.0
    %546 = vmatprep.subr.mxu0 0.0
    %547 = vmatpush2.xpose.msra.mxu0 0.0
    %548 = vmatprep.subr.mxu0 0.0
    %549 = vmatpush2.xpose.msra.mxu0 0.0
    %550 = vmatprep.subr.mxu0 0.0
    %551 = vmatpush2.xpose.msra.mxu0 0.0
    %552 = vmatprep.subr.mxu0 0.0
    %553 = vmatpush2.xpose.msra.mxu0 0.0
    %554 = vmatprep.subr.mxu0 0.0
    %555 = vmatpush2.xpose.msra.mxu0 0.0
    %556 = vmatprep.subr.mxu0 0.0
    %557 = vmatpush2.xpose.msra.mxu0 0.0
    %558 = vmatprep.subr.mxu0 0.0
    %559 = vmatpush2.xpose.msra.mxu0 0.0
    %560 = vmatprep.subr.mxu0 0.0
    %561 = vmatpush2.xpose.msra.mxu0 0.0
    %562 = vmatprep.subr.mxu0 0.0
    %563 = vmatpush2.xpose.msra.mxu0 0.0
    %564 = vmatprep.subr.mxu0 0.0
    %565 = vmatpush2.xpose.msra.mxu0 0.0
    %566 = vmatprep.subr.mxu0 0.0
    %567 = vmatpush2.xpose.msra.mxu0 0.0
    %568 = vmatprep.subr.mxu0 0.0
    %569 = vmatpush2.xpose.msra.mxu0 0.0
    %570 = vmatprep.subr.mxu0 0.0
    %571 = vmatpush2.xpose.msra.mxu0 0.0
    %572 = vmatprep.subr.mxu0 0.0
    %573 = vmatpush2.xpose.msra.mxu0 0.0
    %574 = vmatprep.subr.mxu0 0.0
    %575 = vmatpush2.xpose.msra.mxu0 0.0
    %576 = vmatprep.mubr.f32.mxu0 0.0
    %577 = vmatmul.mubr.f32.gmra.mxu0 %v508
    %v578 = vpop.f32.mrf.mxu0
    %v579 = vadd.f32 %v166, %v578
    %v580 = vpop.f32.mrf.mxu0
    %581 = vdwg.mxu0
    %582 = vrot.lane.b32.xlu0 %v146, 120
    %v583 = vpop.permute.xlu0 %582
    %584 = vrot.lane.b32.xlu0 %v156, 88
    %v585 = vpop.permute.xlu0 %584
    %v586 = vsel %vm176, %v583, 0
    %v588 = vsel %vm176, %v585, 0
    %590 = vmatprep.subr.mxu0 0.0
    %591 = vmatpush1.xpose.msra.mxu0 0.0
    %592 = vmatprep.subr.mxu0 0.0
    %593 = vmatpush1.xpose.msra.mxu0 0.0
    %594 = vmatprep.subr.mxu0 0.0
    %595 = vmatpush1.xpose.msra.mxu0 0.0
    %596 = vmatprep.subr.mxu0 0.0
    %597 = vmatpush1.xpose.msra.mxu0 0.0
    %598 = vmatprep.subr.mxu0 0.0
    %599 = vmatpush1.xpose.msra.mxu0 0.0
    %600 = vmatprep.subr.mxu0 0.0
    %601 = vmatpush1.xpose.msra.mxu0 0.0
    %602 = vmatprep.subr.mxu0 0.0
    %603 = vmatpush1.xpose.msra.mxu0 0.0
    %604 = vmatprep.subr.mxu0 0.0
    %605 = vmatpush1.xpose.msra.mxu0 0.0
    %606 = vmatprep.subr.mxu0 0.0
    %607 = vmatpush1.xpose.msra.mxu0 0.0
    %608 = vmatprep.subr.mxu0 0.0
    %609 = vmatpush1.xpose.msra.mxu0 0.0
    %610 = vmatprep.subr.mxu0 0.0
    %611 = vmatpush1.xpose.msra.mxu0 0.0
    %612 = vmatprep.subr.mxu0 0.0
    %613 = vmatpush1.xpose.msra.mxu0 0.0
    %614 = vmatprep.subr.mxu0 0.0
    %615 = vmatpush1.xpose.msra.mxu0 0.0
    %616 = vmatprep.subr.mxu0 0.0
    %617 = vmatpush1.xpose.msra.mxu0 0.0
    %618 = vmatprep.subr.mxu0 0.0
    %619 = vmatpush1.xpose.msra.mxu0 0.0
    %620 = vmatprep.subr.mxu0 0.0
    %621 = vmatpush1.xpose.msra.mxu0 %v588
    %622 = vmatprep.subr.mxu0 0.0
    %623 = vmatpush2.xpose.msra.mxu0 0.0
    %624 = vmatprep.subr.mxu0 0.0
    %625 = vmatpush2.xpose.msra.mxu0 0.0
    %626 = vmatprep.subr.mxu0 0.0
    %627 = vmatpush2.xpose.msra.mxu0 0.0
    %628 = vmatprep.subr.mxu0 0.0
    %629 = vmatpush2.xpose.msra.mxu0 0.0
    %630 = vmatprep.subr.mxu0 0.0
    %631 = vmatpush2.xpose.msra.mxu0 0.0
    %632 = vmatprep.subr.mxu0 0.0
    %633 = vmatpush2.xpose.msra.mxu0 0.0
    %634 = vmatprep.subr.mxu0 0.0
    %635 = vmatpush2.xpose.msra.mxu0 0.0
    %636 = vmatprep.subr.mxu0 0.0
    %637 = vmatpush2.xpose.msra.mxu0 0.0
    %638 = vmatprep.subr.mxu0 0.0
    %639 = vmatpush2.xpose.msra.mxu0 0.0
    %640 = vmatprep.subr.mxu0 0.0
    %641 = vmatpush2.xpose.msra.mxu0 0.0
    %642 = vmatprep.subr.mxu0 0.0
    %643 = vmatpush2.xpose.msra.mxu0 0.0
    %644 = vmatprep.subr.mxu0 0.0
    %645 = vmatpush2.xpose.msra.mxu0 0.0
    %646 = vmatprep.subr.mxu0 0.0
    %647 = vmatpush2.xpose.msra.mxu0 0.0
    %648 = vmatprep.subr.mxu0 0.0
    %649 = vmatpush2.xpose.msra.mxu0 0.0
    %650 = vmatprep.subr.mxu0 0.0
    %651 = vmatpush2.xpose.msra.mxu0 0.0
    %652 = vmatprep.subr.mxu0 0.0
    %653 = vmatpush2.xpose.msra.mxu0 0.0
    %654 = vmatprep.mubr.f32.mxu0 0.0
    %655 = vmatmul.mubr.f32.gmra.mxu0 %v586
    %v656 = vpop.f32.mrf.mxu0
    %v657 = vadd.f32 %v170, %v656
    %v658 = vpop.f32.mrf.mxu0
    %659 = vdwg.mxu0
    %v660 = vsel %vm176, %v579, -inf
    %661 = vmax.xlane.f32.xlu0 %v660
    %v662 = vpop.xlane.xlu0 %661
    %v663 = vsel %vm176, %v657, -inf
    %664 = vmax.xlane.f32.xlu0 %v663
    %v665 = vpop.xlane.xlu0 %664
    %v666 = vsub.f32 %v579, %v662
    %v667 = vsub.f32 %v657, %v665
    %v668 = vmul.f32 %v666, 1.442695
    %v669 = vpow.pop %v668
    %v670 = vmul.f32 %v667, 1.442695
    %v671 = vpow.pop %v670
    %v672 = vsel %vm176, %v669, 0.0
    %673 = vadd.xlane.f32.xlu0 %v672
    %v674 = vpop.xlane.xlu0 %673
    %v675 = vsel %vm176, %v671, 0.0
    %676 = vadd.xlane.f32.xlu0 %v675
    %v677 = vpop.xlane.xlu0 %676
    %v678 = vrcp.pop %v674
    %v679 = vrcp.pop %v677
    %v680 = vmul.f32 %v669, %v678
    %v681 = vmul.f32 %v671, %v679
    %682 = vrot.lane.b32.xlu0 %v151, 56
    %v683 = vpop.permute.xlu0 %682
    %v686 = vsel %vm176, %v680, 0
    %688 = vmatprep.subr.mxu0 0.0
    %689 = vmatpush1.msra.mxu0 0.0
    %690 = vmatprep.subr.mxu0 0.0
    %691 = vmatpush1.msra.mxu0 0.0
    %692 = vmatprep.subr.mxu0 0.0
    %693 = vmatpush1.msra.mxu0 0.0
    %694 = vmatprep.subr.mxu0 0.0
    %695 = vmatpush1.msra.mxu0 0.0
    %696 = vmatprep.subr.mxu0 0.0
    %697 = vmatpush1.msra.mxu0 0.0
    %698 = vmatprep.subr.mxu0 0.0
    %699 = vmatpush1.msra.mxu0 0.0
    %700 = vmatprep.subr.mxu0 0.0
    %701 = vmatpush1.msra.mxu0 0.0
    %702 = vmatprep.subr.mxu0 0.0
    %703 = vmatpush1.msra.mxu0 0.0
    %704 = vmatprep.subr.mxu0 0.0
    %705 = vmatpush1.msra.mxu0 0.0
    %706 = vmatprep.subr.mxu0 0.0
    %707 = vmatpush1.msra.mxu0 0.0
    %708 = vmatprep.subr.mxu0 0.0
    %709 = vmatpush1.msra.mxu0 0.0
    %710 = vmatprep.subr.mxu0 0.0
    %711 = vmatpush1.msra.mxu0 0.0
    %712 = vmatprep.subr.mxu0 0.0
    %713 = vmatpush1.msra.mxu0 0.0
    %714 = vmatprep.subr.mxu0 0.0
    %715 = vmatpush1.msra.mxu0 0.0
    %716 = vmatprep.subr.mxu0 0.0
    %717 = vmatpush1.msra.mxu0 0.0
    %718 = vmatprep.subr.mxu0 0.0
    %719 = vmatpush1.msra.mxu0 %v683
    %720 = vmatprep.subr.mxu0 0.0
    %721 = vmatpush2.msra.mxu0 0.0
    %722 = vmatprep.subr.mxu0 0.0
    %723 = vmatpush2.msra.mxu0 0.0
    %724 = vmatprep.subr.mxu0 0.0
    %725 = vmatpush2.msra.mxu0 0.0
    %726 = vmatprep.subr.mxu0 0.0
    %727 = vmatpush2.msra.mxu0 0.0
    %728 = vmatprep.subr.mxu0 0.0
    %729 = vmatpush2.msra.mxu0 0.0
    %730 = vmatprep.subr.mxu0 0.0
    %731 = vmatpush2.msra.mxu0 0.0
    %732 = vmatprep.subr.mxu0 0.0
    %733 = vmatpush2.msra.mxu0 0.0
    %734 = vmatprep.subr.mxu0 0.0
    %735 = vmatpush2.msra.mxu0 0.0
    %736 = vmatprep.subr.mxu0 0.0
    %737 = vmatpush2.msra.mxu0 0.0
    %738 = vmatprep.subr.mxu0 0.0
    %739 = vmatpush2.msra.mxu0 0.0
    %740 = vmatprep.subr.mxu0 0.0
    %741 = vmatpush2.msra.mxu0 0.0
    %742 = vmatprep.subr.mxu0 0.0
    %743 = vmatpush2.msra.mxu0 0.0
    %744 = vmatprep.subr.mxu0 0.0
    %745 = vmatpush2.msra.mxu0 0.0
    %746 = vmatprep.subr.mxu0 0.0
    %747 = vmatpush2.msra.mxu0 0.0
    %748 = vmatprep.subr.mxu0 0.0
    %749 = vmatpush2.msra.mxu0 0.0
    %750 = vmatprep.subr.mxu0 0.0
    %751 = vmatpush2.msra.mxu0 0.0
    %752 = vmatprep.mubr.f32.mxu0 0.0
    %753 = vmatmul.mubr.f32.gmra.mxu0 %v686
    %v754 = vpop.f32.mrf.mxu0
    %v755 = vadd.f32 0.0, %v754
    %v756 = vpop.f32.mrf.mxu0
    %757 = vdwg.mxu0
    %758 = vrot.lane.b32.xlu0 %v156, 56
    %v759 = vpop.permute.xlu0 %758
    %v762 = vsel %vm176, %v681, 0
    %764 = vmatprep.subr.mxu0 0.0
    %765 = vmatpush1.msra.mxu0 0.0
    %766 = vmatprep.subr.mxu0 0.0
    %767 = vmatpush1.msra.mxu0 0.0
    %768 = vmatprep.subr.mxu0 0.0
    %769 = vmatpush1.msra.mxu0 0.0
    %770 = vmatprep.subr.mxu0 0.0
    %771 = vmatpush1.msra.mxu0 0.0
    %772 = vmatprep.subr.mxu0 0.0
    %773 = vmatpush1.msra.mxu0 0.0
    %774 = vmatprep.subr.mxu0 0.0
    %775 = vmatpush1.msra.mxu0 0.0
    %776 = vmatprep.subr.mxu0 0.0
    %777 = vmatpush1.msra.mxu0 0.0
    %778 = vmatprep.subr.mxu0 0.0
    %779 = vmatpush1.msra.mxu0 0.0
    %780 = vmatprep.subr.mxu0 0.0
    %781 = vmatpush1.msra.mxu0 0.0
    %782 = vmatprep.subr.mxu0 0.0
    %783 = vmatpush1.msra.mxu0 0.0
    %784 = vmatprep.subr.mxu0 0.0
    %785 = vmatpush1.msra.mxu0 0.0
    %786 = vmatprep.subr.mxu0 0.0
    %787 = vmatpush1.msra.mxu0 0.0
    %788 = vmatprep.subr.mxu0 0.0
    %789 = vmatpush1.msra.mxu0 0.0
    %790 = vmatprep.subr.mxu0 0.0
    %791 = vmatpush1.msra.mxu0 0.0
    %792 = vmatprep.subr.mxu0 0.0
    %793 = vmatpush1.msra.mxu0 0.0
    %794 = vmatprep.subr.mxu0 0.0
    %795 = vmatpush1.msra.mxu0 %v759
    %796 = vmatprep.subr.mxu0 0.0
    %797 = vmatpush2.msra.mxu0 0.0
    %798 = vmatprep.subr.mxu0 0.0
    %799 = vmatpush2.msra.mxu0 0.0
    %800 = vmatprep.subr.mxu0 0.0
    %801 = vmatpush2.msra.mxu0 0.0
    %802 = vmatprep.subr.mxu0 0.0
    %803 = vmatpush2.msra.mxu0 0.0
    %804 = vmatprep.subr.mxu0 0.0
    %805 = vmatpush2.msra.mxu0 0.0
    %806 = vmatprep.subr.mxu0 0.0
    %807 = vmatpush2.msra.mxu0 0.0
    %808 = vmatprep.subr.mxu0 0.0
    %809 = vmatpush2.msra.mxu0 0.0
    %810 = vmatprep.subr.mxu0 0.0
    %811 = vmatpush2.msra.mxu0 0.0
    %812 = vmatprep.subr.mxu0 0.0
    %813 = vmatpush2.msra.mxu0 0.0
    %814 = vmatprep.subr.mxu0 0.0
    %815 = vmatpush2.msra.mxu0 0.0
    %816 = vmatprep.subr.mxu0 0.0
    %817 = vmatpush2.msra.mxu0 0.0
    %818 = vmatprep.subr.mxu0 0.0
    %819 = vmatpush2.msra.mxu0 0.0
    %820 = vmatprep.subr.mxu0 0.0
    %821 = vmatpush2.msra.mxu0 0.0
    %822 = vmatprep.subr.mxu0 0.0
    %823 = vmatpush2.msra.mxu0 0.0
    %824 = vmatprep.subr.mxu0 0.0
    %825 = vmatpush2.msra.mxu0 0.0
    %826 = vmatprep.subr.mxu0 0.0
    %827 = vmatpush2.msra.mxu0 0.0
    %828 = vmatprep.mubr.f32.mxu0 0.0
    %829 = vmatmul.mubr.f32.gmra.mxu0 %v762
    %v830 = vpop.f32.mrf.mxu0
    %v831 = vadd.f32 0.0, %v830
    %v832 = vpop.f32.mrf.mxu0
    %833 = vdwg.mxu0
    %834 = vrot.lane.b32.xlu0 %v141, 112
    %v835 = vpop.permute.xlu0 %834
    %836 = vrot.lane.b32.xlu0 %v151, 80
    %v837 = vpop.permute.xlu0 %836
    %v838 = vsel %vm176, %v835, 0
    %v840 = vsel %vm176, %v837, 0
    %842 = vmatprep.subr.mxu0 0.0
    %843 = vmatpush1.xpose.msra.mxu0 0.0
    %844 = vmatprep.subr.mxu0 0.0
    %845 = vmatpush1.xpose.msra.mxu0 0.0
    %846 = vmatprep.subr.mxu0 0.0
    %847 = vmatpush1.xpose.msra.mxu0 0.0
    %848 = vmatprep.subr.mxu0 0.0
    %849 = vmatpush1.xpose.msra.mxu0 0.0
    %850 = vmatprep.subr.mxu0 0.0
    %851 = vmatpush1.xpose.msra.mxu0 0.0
    %852 = vmatprep.subr.mxu0 0.0
    %853 = vmatpush1.xpose.msra.mxu0 0.0
    %854 = vmatprep.subr.mxu0 0.0
    %855 = vmatpush1.xpose.msra.mxu0 0.0
    %856 = vmatprep.subr.mxu0 0.0
    %857 = vmatpush1.xpose.msra.mxu0 0.0
    %858 = vmatprep.subr.mxu0 0.0
    %859 = vmatpush1.xpose.msra.mxu0 0.0
    %860 = vmatprep.subr.mxu0 0.0
    %861 = vmatpush1.xpose.msra.mxu0 0.0
    %862 = vmatprep.subr.mxu0 0.0
    %863 = vmatpush1.xpose.msra.mxu0 0.0
    %864 = vmatprep.subr.mxu0 0.0
    %865 = vmatpush1.xpose.msra.mxu0 0.0
    %866 = vmatprep.subr.mxu0 0.0
    %867 = vmatpush1.xpose.msra.mxu0 0.0
    %868 = vmatprep.subr.mxu0 0.0
    %869 = vmatpush1.xpose.msra.mxu0 0.0
    %870 = vmatprep.subr.mxu0 0.0
    %871 = vmatpush1.xpose.msra.mxu0 0.0
    %872 = vmatprep.subr.mxu0 0.0
    %873 = vmatpush1.xpose.msra.mxu0 %v840
    %874 = vmatprep.subr.mxu0 0.0
    %875 = vmatpush2.xpose.msra.mxu0 0.0
    %876 = vmatprep.subr.mxu0 0.0
    %877 = vmatpush2.xpose.msra.mxu0 0.0
    %878 = vmatprep.subr.mxu0 0.0
    %879 = vmatpush2.xpose.msra.mxu0 0.0
    %880 = vmatprep.subr.mxu0 0.0
    %881 = vmatpush2.xpose.msra.mxu0 0.0
    %882 = vmatprep.subr.mxu0 0.0
    %883 = vmatpush2.xpose.msra.mxu0 0.0
    %884 = vmatprep.subr.mxu0 0.0
    %885 = vmatpush2.xpose.msra.mxu0 0.0
    %886 = vmatprep.subr.mxu0 0.0
    %887 = vmatpush2.xpose.msra.mxu0 0.0
    %888 = vmatprep.subr.mxu0 0.0
    %889 = vmatpush2.xpose.msra.mxu0 0.0
    %890 = vmatprep.subr.mxu0 0.0
    %891 = vmatpush2.xpose.msra.mxu0 0.0
    %892 = vmatprep.subr.mxu0 0.0
    %893 = vmatpush2.xpose.msra.mxu0 0.0
    %894 = vmatprep.subr.mxu0 0.0
    %895 = vmatpush2.xpose.msra.mxu0 0.0
    %896 = vmatprep.subr.mxu0 0.0
    %897 = vmatpush2.xpose.msra.mxu0 0.0
    %898 = vmatprep.subr.mxu0 0.0
    %899 = vmatpush2.xpose.msra.mxu0 0.0
    %900 = vmatprep.subr.mxu0 0.0
    %901 = vmatpush2.xpose.msra.mxu0 0.0
    %902 = vmatprep.subr.mxu0 0.0
    %903 = vmatpush2.xpose.msra.mxu0 0.0
    %904 = vmatprep.subr.mxu0 0.0
    %905 = vmatpush2.xpose.msra.mxu0 0.0
    %906 = vmatprep.mubr.f32.mxu0 0.0
    %907 = vmatmul.mubr.f32.gmra.mxu0 %v838
    %v908 = vpop.f32.mrf.mxu0
    %v909 = vadd.f32 %v166, %v908
    %v910 = vpop.f32.mrf.mxu0
    %911 = vdwg.mxu0
    %912 = vrot.lane.b32.xlu0 %v146, 112
    %v913 = vpop.permute.xlu0 %912
    %914 = vrot.lane.b32.xlu0 %v156, 80
    %v915 = vpop.permute.xlu0 %914
    %v916 = vsel %vm176, %v913, 0
    %v918 = vsel %vm176, %v915, 0
    %920 = vmatprep.subr.mxu0 0.0
    %921 = vmatpush1.xpose.msra.mxu0 0.0
    %922 = vmatprep.subr.mxu0 0.0
    %923 = vmatpush1.xpose.msra.mxu0 0.0
    %924 = vmatprep.subr.mxu0 0.0
    %925 = vmatpush1.xpose.msra.mxu0 0.0
    %926 = vmatprep.subr.mxu0 0.0
    %927 = vmatpush1.xpose.msra.mxu0 0.0
    %928 = vmatprep.subr.mxu0 0.0
    %929 = vmatpush1.xpose.msra.mxu0 0.0
    %930 = vmatprep.subr.mxu0 0.0
    %931 = vmatpush1.xpose.msra.mxu0 0.0
    %932 = vmatprep.subr.mxu0 0.0
    %933 = vmatpush1.xpose.msra.mxu0 0.0
    %934 = vmatprep.subr.mxu0 0.0
    %935 = vmatpush1.xpose.msra.mxu0 0.0
    %936 = vmatprep.subr.mxu0 0.0
    %937 = vmatpush1.xpose.msra.mxu0 0.0
    %938 = vmatprep.subr.mxu0 0.0
    %939 = vmatpush1.xpose.msra.mxu0 0.0
    %940 = vmatprep.subr.mxu0 0.0
    %941 = vmatpush1.xpose.msra.mxu0 0.0
    %942 = vmatprep.subr.mxu0 0.0
    %943 = vmatpush1.xpose.msra.mxu0 0.0
    %944 = vmatprep.subr.mxu0 0.0
    %945 = vmatpush1.xpose.msra.mxu0 0.0
    %946 = vmatprep.subr.mxu0 0.0
    %947 = vmatpush1.xpose.msra.mxu0 0.0
    %948 = vmatprep.subr.mxu0 0.0
    %949 = vmatpush1.xpose.msra.mxu0 0.0
    %950 = vmatprep.subr.mxu0 0.0
    %951 = vmatpush1.xpose.msra.mxu0 %v918
    %952 = vmatprep.subr.mxu0 0.0
    %953 = vmatpush2.xpose.msra.mxu0 0.0
    %954 = vmatprep.subr.mxu0 0.0
    %955 = vmatpush2.xpose.msra.mxu0 0.0
    %956 = vmatprep.subr.mxu0 0.0
    %957 = vmatpush2.xpose.msra.mxu0 0.0
    %958 = vmatprep.subr.mxu0 0.0
    %959 = vmatpush2.xpose.msra.mxu0 0.0
    %960 = vmatprep.subr.mxu0 0.0
    %961 = vmatpush2.xpose.msra.mxu0 0.0
    %962 = vmatprep.subr.mxu0 0.0
    %963 = vmatpush2.xpose.msra.mxu0 0.0
    %964 = vmatprep.subr.mxu0 0.0
    %965 = vmatpush2.xpose.msra.mxu0 0.0
    %966 = vmatprep.subr.mxu0 0.0
    %967 = vmatpush2.xpose.msra.mxu0 0.0
    %968 = vmatprep.subr.mxu0 0.0
    %969 = vmatpush2.xpose.msra.mxu0 0.0
    %970 = vmatprep.subr.mxu0 0.0
    %971 = vmatpush2.xpose.msra.mxu0 0.0
    %972 = vmatprep.subr.mxu0 0.0
    %973 = vmatpush2.xpose.msra.mxu0 0.0
    %974 = vmatprep.subr.mxu0 0.0
    %975 = vmatpush2.xpose.msra.mxu0 0.0
    %976 = vmatprep.subr.mxu0 0.0
    %977 = vmatpush2.xpose.msra.mxu0 0.0
    %978 = vmatprep.subr.mxu0 0.0
    %979 = vmatpush2.xpose.msra.mxu0 0.0
    %980 = vmatprep.subr.mxu0 0.0
    %981 = vmatpush2.xpose.msra.mxu0 0.0
    %982 = vmatprep.subr.mxu0 0.0
    %983 = vmatpush2.xpose.msra.mxu0 0.0
    %984 = vmatprep.mubr.f32.mxu0 0.0
    %985 = vmatmul.mubr.f32.gmra.mxu0 %v916
    %v986 = vpop.f32.mrf.mxu0
    %v987 = vadd.f32 %v170, %v986
    %v988 = vpop.f32.mrf.mxu0
    %989 = vdwg.mxu0
    %v990 = vsel %vm176, %v909, -inf
    %991 = vmax.xlane.f32.xlu0 %v990
    %v992 = vpop.xlane.xlu0 %991
    %v993 = vsel %vm176, %v987, -inf
    %994 = vmax.xlane.f32.xlu0 %v993
    %v995 = vpop.xlane.xlu0 %994
    %v996 = vsub.f32 %v909, %v992
    %v997 = vsub.f32 %v987, %v995
    %v998 = vmul.f32 %v996, 1.442695
    %v999 = vpow.pop %v998
    %v1000 = vmul.f32 %v997, 1.442695
    %v1001 = vpow.pop %v1000
    %v1002 = vsel %vm176, %v999, 0.0
    %1003 = vadd.xlane.f32.xlu0 %v1002
    %v1004 = vpop.xlane.xlu0 %1003
    %v1005 = vsel %vm176, %v1001, 0.0
    %1006 = vadd.xlane.f32.xlu0 %v1005
    %v1007 = vpop.xlane.xlu0 %1006
    %v1008 = vrcp.pop %v1004
    %v1009 = vrcp.pop %v1007
    %v1010 = vmul.f32 %v999, %v1008
    %v1011 = vmul.f32 %v1001, %v1009
    %1012 = vrot.lane.b32.xlu0 %v151, 48
    %v1013 = vpop.permute.xlu0 %1012
    %v1016 = vsel %vm176, %v1010, 0
    %1018 = vmatprep.subr.mxu0 0.0
    %1019 = vmatpush1.msra.mxu0 0.0
    %1020 = vmatprep.subr.mxu0 0.0
    %1021 = vmatpush1.msra.mxu0 0.0
    %1022 = vmatprep.subr.mxu0 0.0
    %1023 = vmatpush1.msra.mxu0 0.0
    %1024 = vmatprep.subr.mxu0 0.0
    %1025 = vmatpush1.msra.mxu0 0.0
    %1026 = vmatprep.subr.mxu0 0.0
    %1027 = vmatpush1.msra.mxu0 0.0
    %1028 = vmatprep.subr.mxu0 0.0
    %1029 = vmatpush1.msra.mxu0 0.0
    %1030 = vmatprep.subr.mxu0 0.0
    %1031 = vmatpush1.msra.mxu0 0.0
    %1032 = vmatprep.subr.mxu0 0.0
    %1033 = vmatpush1.msra.mxu0 0.0
    %1034 = vmatprep.subr.mxu0 0.0
    %1035 = vmatpush1.msra.mxu0 0.0
    %1036 = vmatprep.subr.mxu0 0.0
    %1037 = vmatpush1.msra.mxu0 0.0
    %1038 = vmatprep.subr.mxu0 0.0
    %1039 = vmatpush1.msra.mxu0 0.0
    %1040 = vmatprep.subr.mxu0 0.0
    %1041 = vmatpush1.msra.mxu0 0.0
    %1042 = vmatprep.subr.mxu0 0.0
    %1043 = vmatpush1.msra.mxu0 0.0
    %1044 = vmatprep.subr.mxu0 0.0
    %1045 = vmatpush1.msra.mxu0 0.0
    %1046 = vmatprep.subr.mxu0 0.0
    %1047 = vmatpush1.msra.mxu0 0.0
    %1048 = vmatprep.subr.mxu0 0.0
    %1049 = vmatpush1.msra.mxu0 %v1013
    %1050 = vmatprep.subr.mxu0 0.0
    %1051 = vmatpush2.msra.mxu0 0.0
    %1052 = vmatprep.subr.mxu0 0.0
    %1053 = vmatpush2.msra.mxu0 0.0
    %1054 = vmatprep.subr.mxu0 0.0
    %1055 = vmatpush2.msra.mxu0 0.0
    %1056 = vmatprep.subr.mxu0 0.0
    %1057 = vmatpush2.msra.mxu0 0.0
    %1058 = vmatprep.subr.mxu0 0.0
    %1059 = vmatpush2.msra.mxu0 0.0
    %1060 = vmatprep.subr.mxu0 0.0
    %1061 = vmatpush2.msra.mxu0 0.0
    %1062 = vmatprep.subr.mxu0 0.0
    %1063 = vmatpush2.msra.mxu0 0.0
    %1064 = vmatprep.subr.mxu0 0.0
    %1065 = vmatpush2.msra.mxu0 0.0
    %1066 = vmatprep.subr.mxu0 0.0
    %1067 = vmatpush2.msra.mxu0 0.0
    %1068 = vmatprep.subr.mxu0 0.0
    %1069 = vmatpush2.msra.mxu0 0.0
    %1070 = vmatprep.subr.mxu0 0.0
    %1071 = vmatpush2.msra.mxu0 0.0
    %1072 = vmatprep.subr.mxu0 0.0
    %1073 = vmatpush2.msra.mxu0 0.0
    %1074 = vmatprep.subr.mxu0 0.0
    %1075 = vmatpush2.msra.mxu0 0.0
    %1076 = vmatprep.subr.mxu0 0.0
    %1077 = vmatpush2.msra.mxu0 0.0
    %1078 = vmatprep.subr.mxu0 0.0
    %1079 = vmatpush2.msra.mxu0 0.0
    %1080 = vmatprep.subr.mxu0 0.0
    %1081 = vmatpush2.msra.mxu0 0.0
    %1082 = vmatprep.mubr.f32.mxu0 0.0
    %1083 = vmatmul.mubr.f32.gmra.mxu0 %v1016
    %v1084 = vpop.f32.mrf.mxu0
    %v1085 = vadd.f32 0.0, %v1084
    %v1086 = vpop.f32.mrf.mxu0
    %1087 = vdwg.mxu0
    %1088 = vrot.lane.b32.xlu0 %v156, 48
    %v1089 = vpop.permute.xlu0 %1088
    %v1092 = vsel %vm176, %v1011, 0
    %1094 = vmatprep.subr.mxu0 0.0
    %1095 = vmatpush1.msra.mxu0 0.0
    %1096 = vmatprep.subr.mxu0 0.0
    %1097 = vmatpush1.msra.mxu0 0.0
    %1098 = vmatprep.subr.mxu0 0.0
    %1099 = vmatpush1.msra.mxu0 0.0
    %1100 = vmatprep.subr.mxu0 0.0
    %1101 = vmatpush1.msra.mxu0 0.0
    %1102 = vmatprep.subr.mxu0 0.0
    %1103 = vmatpush1.msra.mxu0 0.0
    %1104 = vmatprep.subr.mxu0 0.0
    %1105 = vmatpush1.msra.mxu0 0.0
    %1106 = vmatprep.subr.mxu0 0.0
    %1107 = vmatpush1.msra.mxu0 0.0
    %1108 = vmatprep.subr.mxu0 0.0
    %1109 = vmatpush1.msra.mxu0 0.0
    %1110 = vmatprep.subr.mxu0 0.0
    %1111 = vmatpush1.msra.mxu0 0.0
    %1112 = vmatprep.subr.mxu0 0.0
    %1113 = vmatpush1.msra.mxu0 0.0
    %1114 = vmatprep.subr.mxu0 0.0
    %1115 = vmatpush1.msra.mxu0 0.0
    %1116 = vmatprep.subr.mxu0 0.0
    %1117 = vmatpush1.msra.mxu0 0.0
    %1118 = vmatprep.subr.mxu0 0.0
    %1119 = vmatpush1.msra.mxu0 0.0
    %1120 = vmatprep.subr.mxu0 0.0
    %1121 = vmatpush1.msra.mxu0 0.0
    %1122 = vmatprep.subr.mxu0 0.0
    %1123 = vmatpush1.msra.mxu0 0.0
    %1124 = vmatprep.subr.mxu0 0.0
    %1125 = vmatpush1.msra.mxu0 %v1089
    %1126 = vmatprep.subr.mxu0 0.0
    %1127 = vmatpush2.msra.mxu0 0.0
    %1128 = vmatprep.subr.mxu0 0.0
    %1129 = vmatpush2.msra.mxu0 0.0
    %1130 = vmatprep.subr.mxu0 0.0
    %1131 = vmatpush2.msra.mxu0 0.0
    %1132 = vmatprep.subr.mxu0 0.0
    %1133 = vmatpush2.msra.mxu0 0.0
    %1134 = vmatprep.subr.mxu0 0.0
    %1135 = vmatpush2.msra.mxu0 0.0
    %1136 = vmatprep.subr.mxu0 0.0
    %1137 = vmatpush2.msra.mxu0 0.0
    %1138 = vmatprep.subr.mxu0 0.0
    %1139 = vmatpush2.msra.mxu0 0.0
    %1140 = vmatprep.subr.mxu0 0.0
    %1141 = vmatpush2.msra.mxu0 0.0
    %1142 = vmatprep.subr.mxu0 0.0
    %1143 = vmatpush2.msra.mxu0 0.0
    %1144 = vmatprep.subr.mxu0 0.0
    %1145 = vmatpush2.msra.mxu0 0.0
    %1146 = vmatprep.subr.mxu0 0.0
    %1147 = vmatpush2.msra.mxu0 0.0
    %1148 = vmatprep.subr.mxu0 0.0
    %1149 = vmatpush2.msra.mxu0 0.0
    %1150 = vmatprep.subr.mxu0 0.0
    %1151 = vmatpush2.msra.mxu0 0.0
    %1152 = vmatprep.subr.mxu0 0.0
    %1153 = vmatpush2.msra.mxu0 0.0
    %1154 = vmatprep.subr.mxu0 0.0
    %1155 = vmatpush2.msra.mxu0 0.0
    %1156 = vmatprep.subr.mxu0 0.0
    %1157 = vmatpush2.msra.mxu0 0.0
    %1158 = vmatprep.mubr.f32.mxu0 0.0
    %1159 = vmatmul.mubr.f32.gmra.mxu0 %v1092
    %v1160 = vpop.f32.mrf.mxu0
    %v1161 = vadd.f32 0.0, %v1160
    %v1162 = vpop.f32.mrf.mxu0
    %1163 = vdwg.mxu0
    %1164 = vrot.lane.b32.xlu0 %v141, 104
    %v1165 = vpop.permute.xlu0 %1164
    %1166 = vrot.lane.b32.xlu0 %v151, 72
    %v1167 = vpop.permute.xlu0 %1166
    %v1168 = vsel %vm176, %v1165, 0
    %v1170 = vsel %vm176, %v1167, 0
    %1172 = vmatprep.subr.mxu0 0.0
    %1173 = vmatpush1.xpose.msra.mxu0 0.0
    %1174 = vmatprep.subr.mxu0 0.0
    %1175 = vmatpush1.xpose.msra.mxu0 0.0
    %1176 = vmatprep.subr.mxu0 0.0
    %1177 = vmatpush1.xpose.msra.mxu0 0.0
    %1178 = vmatprep.subr.mxu0 0.0
    %1179 = vmatpush1.xpose.msra.mxu0 0.0
    %1180 = vmatprep.subr.mxu0 0.0
    %1181 = vmatpush1.xpose.msra.mxu0 0.0
    %1182 = vmatprep.subr.mxu0 0.0
    %1183 = vmatpush1.xpose.msra.mxu0 0.0
    %1184 = vmatprep.subr.mxu0 0.0
    %1185 = vmatpush1.xpose.msra.mxu0 0.0
    %1186 = vmatprep.subr.mxu0 0.0
    %1187 = vmatpush1.xpose.msra.mxu0 0.0
    %1188 = vmatprep.subr.mxu0 0.0
    %1189 = vmatpush1.xpose.msra.mxu0 0.0
    %1190 = vmatprep.subr.mxu0 0.0
    %1191 = vmatpush1.xpose.msra.mxu0 0.0
    %1192 = vmatprep.subr.mxu0 0.0
    %1193 = vmatpush1.xpose.msra.mxu0 0.0
    %1194 = vmatprep.subr.mxu0 0.0
    %1195 = vmatpush1.xpose.msra.mxu0 0.0
    %1196 = vmatprep.subr.mxu0 0.0
    %1197 = vmatpush1.xpose.msra.mxu0 0.0
    %1198 = vmatprep.subr.mxu0 0.0
    %1199 = vmatpush1.xpose.msra.mxu0 0.0
    %1200 = vmatprep.subr.mxu0 0.0
    %1201 = vmatpush1.xpose.msra.mxu0 0.0
    %1202 = vmatprep.subr.mxu0 0.0
    %1203 = vmatpush1.xpose.msra.mxu0 %v1170
    %1204 = vmatprep.subr.mxu0 0.0
    %1205 = vmatpush2.xpose.msra.mxu0 0.0
    %1206 = vmatprep.subr.mxu0 0.0
    %1207 = vmatpush2.xpose.msra.mxu0 0.0
    %1208 = vmatprep.subr.mxu0 0.0
    %1209 = vmatpush2.xpose.msra.mxu0 0.0
    %1210 = vmatprep.subr.mxu0 0.0
    %1211 = vmatpush2.xpose.msra.mxu0 0.0
    %1212 = vmatprep.subr.mxu0 0.0
    %1213 = vmatpush2.xpose.msra.mxu0 0.0
    %1214 = vmatprep.subr.mxu0 0.0
    %1215 = vmatpush2.xpose.msra.mxu0 0.0
    %1216 = vmatprep.subr.mxu0 0.0
    %1217 = vmatpush2.xpose.msra.mxu0 0.0
    %1218 = vmatprep.subr.mxu0 0.0
    %1219 = vmatpush2.xpose.msra.mxu0 0.0
    %1220 = vmatprep.subr.mxu0 0.0
    %1221 = vmatpush2.xpose.msra.mxu0 0.0
    %1222 = vmatprep.subr.mxu0 0.0
    %1223 = vmatpush2.xpose.msra.mxu0 0.0
    %1224 = vmatprep.subr.mxu0 0.0
    %1225 = vmatpush2.xpose.msra.mxu0 0.0
    %1226 = vmatprep.subr.mxu0 0.0
    %1227 = vmatpush2.xpose.msra.mxu0 0.0
    %1228 = vmatprep.subr.mxu0 0.0
    %1229 = vmatpush2.xpose.msra.mxu0 0.0
    %1230 = vmatprep.subr.mxu0 0.0
    %1231 = vmatpush2.xpose.msra.mxu0 0.0
    %1232 = vmatprep.subr.mxu0 0.0
    %1233 = vmatpush2.xpose.msra.mxu0 0.0
    %1234 = vmatprep.subr.mxu0 0.0
    %1235 = vmatpush2.xpose.msra.mxu0 0.0
    %1236 = vmatprep.mubr.f32.mxu0 0.0
    %1237 = vmatmul.mubr.f32.gmra.mxu0 %v1168
    %v1238 = vpop.f32.mrf.mxu0
    %v1239 = vadd.f32 %v166, %v1238
    %v1240 = vpop.f32.mrf.mxu0
    %1241 = vdwg.mxu0
    %1242 = vrot.lane.b32.xlu0 %v146, 104
    %v1243 = vpop.permute.xlu0 %1242
    %1244 = vrot.lane.b32.xlu0 %v156, 72
    %v1245 = vpop.permute.xlu0 %1244
    %v1246 = vsel %vm176, %v1243, 0
    %v1248 = vsel %vm176, %v1245, 0
    %1250 = vmatprep.subr.mxu0 0.0
    %1251 = vmatpush1.xpose.msra.mxu0 0.0
    %1252 = vmatprep.subr.mxu0 0.0
    %1253 = vmatpush1.xpose.msra.mxu0 0.0
    %1254 = vmatprep.subr.mxu0 0.0
    %1255 = vmatpush1.xpose.msra.mxu0 0.0
    %1256 = vmatprep.subr.mxu0 0.0
    %1257 = vmatpush1.xpose.msra.mxu0 0.0
    %1258 = vmatprep.subr.mxu0 0.0
    %1259 = vmatpush1.xpose.msra.mxu0 0.0
    %1260 = vmatprep.subr.mxu0 0.0
    %1261 = vmatpush1.xpose.msra.mxu0 0.0
    %1262 = vmatprep.subr.mxu0 0.0
    %1263 = vmatpush1.xpose.msra.mxu0 0.0
    %1264 = vmatprep.subr.mxu0 0.0
    %1265 = vmatpush1.xpose.msra.mxu0 0.0
    %1266 = vmatprep.subr.mxu0 0.0
    %1267 = vmatpush1.xpose.msra.mxu0 0.0
    %1268 = vmatprep.subr.mxu0 0.0
    %1269 = vmatpush1.xpose.msra.mxu0 0.0
    %1270 = vmatprep.subr.mxu0 0.0
    %1271 = vmatpush1.xpose.msra.mxu0 0.0
    %1272 = vmatprep.subr.mxu0 0.0
    %1273 = vmatpush1.xpose.msra.mxu0 0.0
    %1274 = vmatprep.subr.mxu0 0.0
    %1275 = vmatpush1.xpose.msra.mxu0 0.0
    %1276 = vmatprep.subr.mxu0 0.0
    %1277 = vmatpush1.xpose.msra.mxu0 0.0
    %1278 = vmatprep.subr.mxu0 0.0
    %1279 = vmatpush1.xpose.msra.mxu0 0.0
    %1280 = vmatprep.subr.mxu0 0.0
    %1281 = vmatpush1.xpose.msra.mxu0 %v1248
    %1282 = vmatprep.subr.mxu0 0.0
    %1283 = vmatpush2.xpose.msra.mxu0 0.0
    %1284 = vmatprep.subr.mxu0 0.0
    %1285 = vmatpush2.xpose.msra.mxu0 0.0
    %1286 = vmatprep.subr.mxu0 0.0
    %1287 = vmatpush2.xpose.msra.mxu0 0.0
    %1288 = vmatprep.subr.mxu0 0.0
    %1289 = vmatpush2.xpose.msra.mxu0 0.0
    %1290 = vmatprep.subr.mxu0 0.0
    %1291 = vmatpush2.xpose.msra.mxu0 0.0
    %1292 = vmatprep.subr.mxu0 0.0
    %1293 = vmatpush2.xpose.msra.mxu0 0.0
    %1294 = vmatprep.subr.mxu0 0.0
    %1295 = vmatpush2.xpose.msra.mxu0 0.0
    %1296 = vmatprep.subr.mxu0 0.0
    %1297 = vmatpush2.xpose.msra.mxu0 0.0
    %1298 = vmatprep.subr.mxu0 0.0
    %1299 = vmatpush2.xpose.msra.mxu0 0.0
    %1300 = vmatprep.subr.mxu0 0.0
    %1301 = vmatpush2.xpose.msra.mxu0 0.0
    %1302 = vmatprep.subr.mxu0 0.0
    %1303 = vmatpush2.xpose.msra.mxu0 0.0
    %1304 = vmatprep.subr.mxu0 0.0
    %1305 = vmatpush2.xpose.msra.mxu0 0.0
    %1306 = vmatprep.subr.mxu0 0.0
    %1307 = vmatpush2.xpose.msra.mxu0 0.0
    %1308 = vmatprep.subr.mxu0 0.0
    %1309 = vmatpush2.xpose.msra.mxu0 0.0
    %1310 = vmatprep.subr.mxu0 0.0
    %1311 = vmatpush2.xpose.msra.mxu0 0.0
    %1312 = vmatprep.subr.mxu0 0.0
    %1313 = vmatpush2.xpose.msra.mxu0 0.0
    %1314 = vmatprep.mubr.f32.mxu0 0.0
    %1315 = vmatmul.mubr.f32.gmra.mxu0 %v1246
    %v1316 = vpop.f32.mrf.mxu0
    %v1317 = vadd.f32 %v170, %v1316
    %v1318 = vpop.f32.mrf.mxu0
    %1319 = vdwg.mxu0
    %v1320 = vsel %vm176, %v1239, -inf
    %1321 = vmax.xlane.f32.xlu0 %v1320
    %v1322 = vpop.xlane.xlu0 %1321
    %v1323 = vsel %vm176, %v1317, -inf
    %1324 = vmax.xlane.f32.xlu0 %v1323
    %v1325 = vpop.xlane.xlu0 %1324
    %v1326 = vsub.f32 %v1239, %v1322
    %v1327 = vsub.f32 %v1317, %v1325
    %v1328 = vmul.f32 %v1326, 1.442695
    %v1329 = vpow.pop %v1328
    %v1330 = vmul.f32 %v1327, 1.442695
    %v1331 = vpow.pop %v1330
    %v1332 = vsel %vm176, %v1329, 0.0
    %1333 = vadd.xlane.f32.xlu0 %v1332
    %v1334 = vpop.xlane.xlu0 %1333
    %v1335 = vsel %vm176, %v1331, 0.0
    %1336 = vadd.xlane.f32.xlu0 %v1335
    %v1337 = vpop.xlane.xlu0 %1336
    %v1338 = vrcp.pop %v1334
    %v1339 = vrcp.pop %v1337
    %v1340 = vmul.f32 %v1329, %v1338
    %v1341 = vmul.f32 %v1331, %v1339
    %1342 = vrot.lane.b32.xlu0 %v151, 40
    %v1343 = vpop.permute.xlu0 %1342
    %v1346 = vsel %vm176, %v1340, 0
    %1348 = vmatprep.subr.mxu0 0.0
    %1349 = vmatpush1.msra.mxu0 0.0
    %1350 = vmatprep.subr.mxu0 0.0
    %1351 = vmatpush1.msra.mxu0 0.0
    %1352 = vmatprep.subr.mxu0 0.0
    %1353 = vmatpush1.msra.mxu0 0.0
    %1354 = vmatprep.subr.mxu0 0.0
    %1355 = vmatpush1.msra.mxu0 0.0
    %1356 = vmatprep.subr.mxu0 0.0
    %1357 = vmatpush1.msra.mxu0 0.0
    %1358 = vmatprep.subr.mxu0 0.0
    %1359 = vmatpush1.msra.mxu0 0.0
    %1360 = vmatprep.subr.mxu0 0.0
    %1361 = vmatpush1.msra.mxu0 0.0
    %1362 = vmatprep.subr.mxu0 0.0
    %1363 = vmatpush1.msra.mxu0 0.0
    %1364 = vmatprep.subr.mxu0 0.0
    %1365 = vmatpush1.msra.mxu0 0.0
    %1366 = vmatprep.subr.mxu0 0.0
    %1367 = vmatpush1.msra.mxu0 0.0
    %1368 = vmatprep.subr.mxu0 0.0
    %1369 = vmatpush1.msra.mxu0 0.0
    %1370 = vmatprep.subr.mxu0 0.0
    %1371 = vmatpush1.msra.mxu0 0.0
    %1372 = vmatprep.subr.mxu0 0.0
    %1373 = vmatpush1.msra.mxu0 0.0
    %1374 = vmatprep.subr.mxu0 0.0
    %1375 = vmatpush1.msra.mxu0 0.0
    %1376 = vmatprep.subr.mxu0 0.0
    %1377 = vmatpush1.msra.mxu0 0.0
    %1378 = vmatprep.subr.mxu0 0.0
    %1379 = vmatpush1.msra.mxu0 %v1343
    %1380 = vmatprep.subr.mxu0 0.0
    %1381 = vmatpush2.msra.mxu0 0.0
    %1382 = vmatprep.subr.mxu0 0.0
    %1383 = vmatpush2.msra.mxu0 0.0
    %1384 = vmatprep.subr.mxu0 0.0
    %1385 = vmatpush2.msra.mxu0 0.0
    %1386 = vmatprep.subr.mxu0 0.0
    %1387 = vmatpush2.msra.mxu0 0.0
    %1388 = vmatprep.subr.mxu0 0.0
    %1389 = vmatpush2.msra.mxu0 0.0
    %1390 = vmatprep.subr.mxu0 0.0
    %1391 = vmatpush2.msra.mxu0 0.0
    %1392 = vmatprep.subr.mxu0 0.0
    %1393 = vmatpush2.msra.mxu0 0.0
    %1394 = vmatprep.subr.mxu0 0.0
    %1395 = vmatpush2.msra.mxu0 0.0
    %1396 = vmatprep.subr.mxu0 0.0
    %1397 = vmatpush2.msra.mxu0 0.0
    %1398 = vmatprep.subr.mxu0 0.0
    %1399 = vmatpush2.msra.mxu0 0.0
    %1400 = vmatprep.subr.mxu0 0.0
    %1401 = vmatpush2.msra.mxu0 0.0
    %1402 = vmatprep.subr.mxu0 0.0
    %1403 = vmatpush2.msra.mxu0 0.0
    %1404 = vmatprep.subr.mxu0 0.0
    %1405 = vmatpush2.msra.mxu0 0.0
    %1406 = vmatprep.subr.mxu0 0.0
    %1407 = vmatpush2.msra.mxu0 0.0
    %1408 = vmatprep.subr.mxu0 0.0
    %1409 = vmatpush2.msra.mxu0 0.0
    %1410 = vmatprep.subr.mxu0 0.0
    %1411 = vmatpush2.msra.mxu0 0.0
    %1412 = vmatprep.mubr.f32.mxu0 0.0
    %1413 = vmatmul.mubr.f32.gmra.mxu0 %v1346
    %v1414 = vpop.f32.mrf.mxu0
    %v1415 = vadd.f32 0.0, %v1414
    %v1416 = vpop.f32.mrf.mxu0
    %1417 = vdwg.mxu0
    %1418 = vrot.lane.b32.xlu0 %v156, 40
    %v1419 = vpop.permute.xlu0 %1418
    %v1422 = vsel %vm176, %v1341, 0
    %1424 = vmatprep.subr.mxu0 0.0
    %1425 = vmatpush1.msra.mxu0 0.0
    %1426 = vmatprep.subr.mxu0 0.0
    %1427 = vmatpush1.msra.mxu0 0.0
    %1428 = vmatprep.subr.mxu0 0.0
    %1429 = vmatpush1.msra.mxu0 0.0
    %1430 = vmatprep.subr.mxu0 0.0
    %1431 = vmatpush1.msra.mxu0 0.0
    %1432 = vmatprep.subr.mxu0 0.0
    %1433 = vmatpush1.msra.mxu0 0.0
    %1434 = vmatprep.subr.mxu0 0.0
    %1435 = vmatpush1.msra.mxu0 0.0
    %1436 = vmatprep.subr.mxu0 0.0
    %1437 = vmatpush1.msra.mxu0 0.0
    %1438 = vmatprep.subr.mxu0 0.0
    %1439 = vmatpush1.msra.mxu0 0.0
    %1440 = vmatprep.subr.mxu0 0.0
    %1441 = vmatpush1.msra.mxu0 0.0
    %1442 = vmatprep.subr.mxu0 0.0
    %1443 = vmatpush1.msra.mxu0 0.0
    %1444 = vmatprep.subr.mxu0 0.0
    %1445 = vmatpush1.msra.mxu0 0.0
    %1446 = vmatprep.subr.mxu0 0.0
    %1447 = vmatpush1.msra.mxu0 0.0
    %1448 = vmatprep.subr.mxu0 0.0
    %1449 = vmatpush1.msra.mxu0 0.0
    %1450 = vmatprep.subr.mxu0 0.0
    %1451 = vmatpush1.msra.mxu0 0.0
    %1452 = vmatprep.subr.mxu0 0.0
    %1453 = vmatpush1.msra.mxu0 0.0
    %1454 = vmatprep.subr.mxu0 0.0
    %1455 = vmatpush1.msra.mxu0 %v1419
    %1456 = vmatprep.subr.mxu0 0.0
    %1457 = vmatpush2.msra.mxu0 0.0
    %1458 = vmatprep.subr.mxu0 0.0
    %1459 = vmatpush2.msra.mxu0 0.0
    %1460 = vmatprep.subr.mxu0 0.0
    %1461 = vmatpush2.msra.mxu0 0.0
    %1462 = vmatprep.subr.mxu0 0.0
    %1463 = vmatpush2.msra.mxu0 0.0
    %1464 = vmatprep.subr.mxu0 0.0
    %1465 = vmatpush2.msra.mxu0 0.0
    %1466 = vmatprep.subr.mxu0 0.0
    %1467 = vmatpush2.msra.mxu0 0.0
    %1468 = vmatprep.subr.mxu0 0.0
    %1469 = vmatpush2.msra.mxu0 0.0
    %1470 = vmatprep.subr.mxu0 0.0
    %1471 = vmatpush2.msra.mxu0 0.0
    %1472 = vmatprep.subr.mxu0 0.0
    %1473 = vmatpush2.msra.mxu0 0.0
    %1474 = vmatprep.subr.mxu0 0.0
    %1475 = vmatpush2.msra.mxu0 0.0
    %1476 = vmatprep.subr.mxu0 0.0
    %1477 = vmatpush2.msra.mxu0 0.0
    %1478 = vmatprep.subr.mxu0 0.0
    %1479 = vmatpush2.msra.mxu0 0.0
    %1480 = vmatprep.subr.mxu0 0.0
    %1481 = vmatpush2.msra.mxu0 0.0
    %1482 = vmatprep.subr.mxu0 0.0
    %1483 = vmatpush2.msra.mxu0 0.0
    %1484 = vmatprep.subr.mxu0 0.0
    %1485 = vmatpush2.msra.mxu0 0.0
    %1486 = vmatprep.subr.mxu0 0.0
    %1487 = vmatpush2.msra.mxu0 0.0
    %1488 = vmatprep.mubr.f32.mxu0 0.0
    %1489 = vmatmul.mubr.f32.gmra.mxu0 %v1422
    %v1490 = vpop.f32.mrf.mxu0
    %v1491 = vadd.f32 0.0, %v1490
    %v1492 = vpop.f32.mrf.mxu0
    %1493 = vdwg.mxu0
    %1496 = vrot.lane.b32.xlu0 %v755, 8
    %v1497 = vpop.permute.xlu0 %1496
    %1498 = vrot.lane.b32.xlu0 %v831, 8
    %v1499 = vpop.permute.xlu0 %1498
    %1504 = vrot.lane.b32.xlu0 %v1085, 16
    %v1505 = vpop.permute.xlu0 %1504
    %1506 = vrot.lane.b32.xlu0 %v1161, 16
    %v1507 = vpop.permute.xlu0 %1506
    %1512 = vrot.lane.b32.xlu0 %v1415, 24
    %v1513 = vpop.permute.xlu0 %1512
    %1514 = vrot.lane.b32.xlu0 %v1491, 24
    %v1515 = vpop.permute.xlu0 %1514
    %v1518 = vsel %vm176, %v425, %v1497
    %v1519 = vsel %vm176, %v501, %v1499
    %vm1520 = vcmask 130048
    %v1521 = vsel %vm1520, %v1518, %v1505
    %v1522 = vsel %vm1520, %v1519, %v1507
    %vm1523 = vcmask 195584
    %v1524 = vsel %vm1523, %v1521, %v1513
    %v1525 = vsel %vm1523, %v1522, %v1515
    %1526 = vst.msk [vmem:[#allocation7] sm:$0xff] %vm61, %v1524
    %1527 = vst.msk [vmem:[#allocation7 + $0x8] sm:$0xff] %vm61, %v1525
    // Predicated region
    $region26: #{tpu_custom_call.1} parent=1 // pred_check
      _
    $region27: #{tpu_custom_call.1} parent=1 // pred_check_branch
      %1529 = sbr.rel (0) target = $region29
    $region28: #{tpu_custom_call.1} parent=1 // pred_region
      %s1531 = ssub.s32 256, 256
      %1532 = vsyncadd [#allocation4], %s1531
      %s1533 = sshll.u32 [#allocation7], 4
      %s1534 = int_to_ptr.vmem [resolvable:$true] %s1533
      %1539 = dma.vmem_to_hbm [thread:$0]  %s1534, 256, %s4, [#allocation4], 128, 128, 8
    $region29: #{tpu_custom_call.1} parent=1 // pred_fallthru
      _
    // Predicated region
    $region30: #{tpu_custom_call.1} parent=1 // pred_check
      _
    $region31: #{tpu_custom_call.1} parent=1 // pred_check_branch
      %1541 = sbr.rel (0) target = $region33
    $region32: #{tpu_custom_call.1} parent=1 // pred_region
      %1542 = dma.done [#allocation4], 256
    $region33: #{tpu_custom_call.1} parent=1 // pred_fallthru
      _
    %1543 = vsyncpa [#allocation3], 1
    %1544 = vsyncpa [#allocation6], 1
    %1545 = vsyncpa [#allocation4], 1

</llo_original>
